<compile_context>
chip_gen: v7x
topology: tpu7x:2x2x1
jax: 0.10.0
libtpu: 0.0.40
codegen_flags: <defaults>
</compile_context>

<pallas_src>
import jax
import jax.numpy as jnp
from jax import lax
from jax.experimental import pallas as pl
from jax.experimental.pallas import tpu as pltpu

# Shapes implied by the module: fc1 = Linear(32 * 22, 128) and two MaxPool1d(2)
# stages => input length 88; conv1: 3 -> 16, conv2: 16 -> 32.
B = 2
C_IN = 3
L1 = 88
L2 = L1 // 2      # 44 after first pool
L3 = L1 // 4      # 22 after second pool
C1 = 16
C2 = 32
HID = 128
NUM_CLASSES = 4

N1 = B * L1       # 176 rows entering conv1 (row = b*L1 + l, channels last)
N2 = B * L2       # 88 rows entering conv2
N3 = B * L3       # 44 pooled conv2 rows

K1 = 3 * C_IN     # 9   im2col contraction for conv1
K2 = 3 * C1       # 48  im2col contraction for conv2
KF = L3 * C2      # 704 flattened contraction for fc1

# packed f32 constant-slab layout (rows x 128 lanes), single DMA
_W1_R = 0          # rows 0:9    lanes 0:16   conv1 weight, row = k*C_IN + c
_W2_R = 16         # rows 16:64  lanes 0:32   conv2 weight, row = k*C1 + c
_B1_R = 64         # row  64     lanes 0:16   conv1 bias
_B2_R = 65         # row  65     lanes 0:32   conv2 bias
_BF1_R = 66        # row  66     lanes 0:128  fc1 bias
_BF2_R = 67        # row  67     lanes 0:4    fc2 bias
_CONST_ROWS = 72


def _edge_masks(n_rows, seg_len):
    """(first, last) (n_rows,1) bool masks marking the first / last position of
    every length-seg_len segment.  One iota, reused for both masks."""
    row = lax.broadcasted_iota(jnp.int32, (n_rows, 1), 0)
    first = row == 0
    last = row == seg_len - 1
    for s in range(1, n_rows // seg_len):
        first = jnp.logical_or(first, row == s * seg_len)
        last = jnp.logical_or(last, row == (s + 1) * seg_len - 1)
    return first, last


# --------------------------- fused Pallas kernel -----------------------------

def lidar_fused_kernel(xp_ref, const_ref, wbig_ref, out_ref, s_y1, s_h1, s_y2):
    f32 = jnp.float32
    bf16 = jnp.bfloat16
    zero = f32(0.0)

    # ---- edge masks (iota computed once per row count, reused) -------------
    first1, last1 = _edge_masks(N1, L1)
    first2, last2 = _edge_masks(N2, L2)

    # ---- weights / biases: one f32 slab + one bf16 slab ---------------------
    w1 = const_ref[_W1_R:_W1_R + K1, 0:C1].astype(bf16)          # (9, 16)
    w2 = const_ref[_W2_R:_W2_R + K2, 0:C2].astype(bf16)          # (48, 32)
    b1 = const_ref[_B1_R:_B1_R + 1, 0:C1]                        # (1, 16)  f32
    b2 = const_ref[_B2_R:_B2_R + 1, 0:C2]                        # (1, 32)  f32
    bf1 = const_ref[_BF1_R:_BF1_R + 1, 0:HID]                    # (1, 128) f32
    bf2 = const_ref[_BF2_R:_BF2_R + 1, 0:NUM_CLASSES]            # (1, 4)   f32
    wf1 = wbig_ref[0:KF, :]                                      # (704, 128) bf16
    wf2 = wbig_ref[KF:KF + HID, 0:NUM_CLASSES]                   # (128, 4)   bf16

    # ---- conv1 (k=3, padding=1) as ONE im2col matmul + ReLU -----------------
    # xp_ref[1 + b*L1 + l, :] = x[b, :, l]; one zero row of padding at each end.
    xm = jnp.where(first1, zero, xp_ref[pl.ds(0, N1), :])        # x[l-1]
    xc = xp_ref[pl.ds(1, N1), :]                                 # x[l]
    xp = jnp.where(last1, zero, xp_ref[pl.ds(2, N1), :])         # x[l+1]
    x9 = jnp.concatenate([xm, xc, xp], axis=-1).astype(bf16)     # (176, 9)
    y1 = jnp.dot(x9, w1, preferred_element_type=f32) + b1        # (176, 16) f32
    s_y1[...] = jnp.maximum(y1, zero)

    # ---- maxpool(2) computed ONCE; +/-1 taps via padded-scratch offset reads
    h1 = jnp.maximum(s_y1[pl.ds(0, N2, stride=2), :],
                     s_y1[pl.ds(1, N2, stride=2), :])            # (88, 16) f32
    s_h1[pl.ds(1, N2), :] = h1
    # pad rows 0 and N2+1 are left uninitialized: every read of them is
    # select-masked below, so their contents never influence the result.
    h1m = jnp.where(first2, zero, s_h1[pl.ds(0, N2), :])         # h1[l-1]
    h1p = jnp.where(last2, zero, s_h1[pl.ds(2, N2), :])          # h1[l+1]

    # ---- conv2 (k=3, padding=1) as ONE im2col matmul + ReLU -----------------
    h48 = jnp.concatenate([h1m, h1, h1p], axis=-1).astype(bf16)  # (88, 48)
    y2 = jnp.dot(h48, w2, preferred_element_type=f32) + b2       # (88, 32) f32
    s_y2[...] = jnp.maximum(y2, zero)

    # ---- maxpool(2) fused with the flatten -> single fc1 matmul -------------
    # flat[b, l*32 + c] = max(y2[b*44+2l, c], y2[b*44+2l+1, c])
    pieces = []
    for l in range(L3):
        even = s_y2[pl.ds(2 * l, 2, stride=L2), :]               # rows {2l, 44+2l}
        odd = s_y2[pl.ds(2 * l + 1, 2, stride=L2), :]            # rows {2l+1, 45+2l}
        pieces.append(jnp.maximum(even, odd))                    # (2, 32)
    flat = jnp.concatenate(pieces, axis=-1).astype(bf16)         # (2, 704)

    h = jnp.maximum(jnp.dot(flat, wf1, preferred_element_type=f32) + bf1, zero)

    # ---- fc2 -----------------------------------------------------------------
    out_ref[...] = jnp.dot(h.astype(bf16), wf2,
                           preferred_element_type=f32) + bf2     # (2, 4)


# --------------------------- params / wrapper --------------------------------

def init_params(key, num_classes=NUM_CLASSES):
    ks = jax.random.split(key, 8)
    return {
        "conv1_w": 0.1 * jax.random.normal(ks[0], (C1, C_IN, 3), jnp.float32),
        "conv1_b": 0.1 * jax.random.normal(ks[1], (C1,), jnp.float32),
        "conv2_w": 0.1 * jax.random.normal(ks[2], (C2, C1, 3), jnp.float32),
        "conv2_b": 0.1 * jax.random.normal(ks[3], (C2,), jnp.float32),
        "fc1_w": 0.1 * jax.random.normal(ks[4], (HID, C2 * L3), jnp.float32),
        "fc1_b": 0.1 * jax.random.normal(ks[5], (HID,), jnp.float32),
        "fc2_w": 0.1 * jax.random.normal(ks[6], (num_classes, HID), jnp.float32),
        "fc2_b": 0.1 * jax.random.normal(ks[7], (num_classes,), jnp.float32),
    }


def prepare_params(params):
    """One-time repack of PyTorch-layout weights into two DMA slabs
    (hoisted out of the jitted forward, runs once)."""
    # conv taps flattened for im2col: row = k*Cin + c, col = out channel
    w1 = jnp.transpose(params["conv1_w"], (2, 1, 0)).reshape(K1, C1)     # (9, 16)
    w2 = jnp.transpose(params["conv2_w"], (2, 1, 0)).reshape(K2, C2)     # (48, 32)
    # PyTorch flattens (B, C2, L3) as c*L3 + l; regroup rows as l*C2 + c
    wf1 = jnp.transpose(params["fc1_w"].reshape(HID, C2, L3),
                        (2, 1, 0)).reshape(KF, HID)                      # (704, 128)
    wf2 = params["fc2_w"].T                                              # (128, nc)

    # bf16 slab with the two big fc weights (single DMA, MXU-ready)
    w_big = jnp.zeros((KF + HID, HID), jnp.bfloat16)
    w_big = w_big.at[:KF, :].set(wf1.astype(jnp.bfloat16))
    w_big = w_big.at[KF:, :NUM_CLASSES].set(wf2.astype(jnp.bfloat16))

    # f32 slab with every small constant (single DMA)
    const = jnp.zeros((_CONST_ROWS, 128), jnp.float32)
    const = const.at[_W1_R:_W1_R + K1, 0:C1].set(w1)
    const = const.at[_W2_R:_W2_R + K2, 0:C2].set(w2)
    const = const.at[_B1_R, 0:C1].set(params["conv1_b"])
    const = const.at[_B2_R, 0:C2].set(params["conv2_b"])
    const = const.at[_BF1_R, 0:HID].set(params["fc1_b"])
    const = const.at[_BF2_R, 0:NUM_CLASSES].set(params["fc2_b"])
    return {"const": const, "w_big": w_big}


@jax.jit
def lidar_cnn_forward(x, prep):
    """x: (B, 3, 88) NCL input (PyTorch layout); prep: prepare_params output."""
    b = x.shape[0]
    # channels-last slab with one zero row of spatial padding at each end
    x2d = jnp.transpose(x, (0, 2, 1)).reshape(b * L1, C_IN)
    x_pad = jnp.pad(x2d, ((1, 1), (0, 0)))

    vmem = pl.BlockSpec(memory_space=pltpu.MemorySpace.VMEM)
    return pl.pallas_call(
        lidar_fused_kernel,
        out_shape=jax.ShapeDtypeStruct((b, NUM_CLASSES), jnp.float32),
        in_specs=[vmem, vmem, vmem],
        out_specs=vmem,
        scratch_shapes=[
            pltpu.VMEM((N1, C1), jnp.float32),       # ReLU(conv1)
            pltpu.VMEM((N2 + 2, C1), jnp.float32),   # pooled conv1, +/-1 pad rows
            pltpu.VMEM((N2, C2), jnp.float32),       # ReLU(conv2)
        ],
    )(x_pad, prep["const"], prep["w_big"])


# --------------------------- pure-JAX reference ------------------------------

def reference_forward(x, params):
    hp = lax.Precision.HIGHEST
    dn = ("NCH", "OIH", "NCH")
    bsz = x.shape[0]
    y = lax.conv_general_dilated(x, params["conv1_w"], (1,), [(1, 1)],
                                 dimension_numbers=dn, precision=hp)
    y = jnp.maximum(y + params["conv1_b"][None, :, None], 0.0)
    y = jnp.max(y.reshape(bsz, C1, L2, 2), axis=-1)
    y = lax.conv_general_dilated(y, params["conv2_w"], (1,), [(1, 1)],
                                 dimension_numbers=dn, precision=hp)
    y = jnp.maximum(y + params["conv2_b"][None, :, None], 0.0)
    y = jnp.max(y.reshape(bsz, C2, L3, 2), axis=-1)
    flat = y.reshape(bsz, C2 * L3)
    h = jnp.maximum(jnp.dot(flat, params["fc1_w"].T, precision=hp)
                    + params["fc1_b"], 0.0)
    return jnp.dot(h, params["fc2_w"].T, precision=hp) + params["fc2_b"]


if __name__ == "__main__":
    key = jax.random.PRNGKey(0)
    kx, kp = jax.random.split(key)
    x = jax.random.normal(kx, (B, C_IN, L1), jnp.float32)
    params = init_params(kp)
    prep = prepare_params(params)          # one-time weight repack, not per call

    out = jax.block_until_ready(lidar_cnn_forward(x, prep))
    ref = reference_forward(x, params)
    assert out.shape == (B, NUM_CLASSES)
    # bf16 MXU operands (f32 accumulate) per perf review => slightly looser
    # tolerance than a pure-f32 kernel; observed error is well inside this.
    if not jnp.allclose(out, ref, atol=2e-2, rtol=2e-2):
        raise AssertionError(
            f"kernel/reference mismatch, max abs err = {jnp.max(jnp.abs(out - ref))}")
    print("KERNEL_OK")
</pallas_src>

<mosaic_0001>
module attributes {stable_mosaic.version = 11 : i64} {
  func.func @lidar_fused_kernel(%arg0: memref<178x3xf32, #tpu.memory_space<vmem>>, %arg1: memref<72x128xf32, #tpu.memory_space<vmem>>, %arg2: memref<832x128xbf16, #tpu.memory_space<vmem>>, %arg3: memref<2x4xf32, #tpu.memory_space<vmem>>, %arg4: memref<176x16xf32, #tpu.memory_space<vmem>>, %arg5: memref<90x16xf32, #tpu.memory_space<vmem>>, %arg6: memref<88x32xf32, #tpu.memory_space<vmem>>) attributes {dimension_semantics = [], scalar_prefetch = 0 : i64, scratch_operands = 3 : i64, tpu.core_type = #tpu.core_type<tc>} {
    %0 = tpu.iota {dimensions = array<i32: 0>} : vector<176x1xi32>
    %c0_i32 = arith.constant 0 : i32
    %1 = vector.broadcast %c0_i32 : i32 to vector<176x1xi32>
    %2 = arith.cmpi eq, %0, %1 : vector<176x1xi32>
    %c87_i32 = arith.constant 87 : i32
    %3 = vector.broadcast %c87_i32 : i32 to vector<176x1xi32>
    %4 = arith.cmpi eq, %0, %3 : vector<176x1xi32>
    %c88_i32 = arith.constant 88 : i32
    %5 = vector.broadcast %c88_i32 : i32 to vector<176x1xi32>
    %6 = arith.cmpi eq, %0, %5 : vector<176x1xi32>
    %7 = arith.ori %2, %6 : vector<176x1xi1>
    %c175_i32 = arith.constant 175 : i32
    %8 = vector.broadcast %c175_i32 : i32 to vector<176x1xi32>
    %9 = arith.cmpi eq, %0, %8 : vector<176x1xi32>
    %10 = arith.ori %4, %9 : vector<176x1xi1>
    %11 = tpu.iota {dimensions = array<i32: 0>} : vector<88x1xi32>
    %c0_i32_0 = arith.constant 0 : i32
    %12 = vector.broadcast %c0_i32_0 : i32 to vector<88x1xi32>
    %13 = arith.cmpi eq, %11, %12 : vector<88x1xi32>
    %c43_i32 = arith.constant 43 : i32
    %14 = vector.broadcast %c43_i32 : i32 to vector<88x1xi32>
    %15 = arith.cmpi eq, %11, %14 : vector<88x1xi32>
    %c44_i32 = arith.constant 44 : i32
    %16 = vector.broadcast %c44_i32 : i32 to vector<88x1xi32>
    %17 = arith.cmpi eq, %11, %16 : vector<88x1xi32>
    %18 = arith.ori %13, %17 : vector<88x1xi1>
    %c87_i32_1 = arith.constant 87 : i32
    %19 = vector.broadcast %c87_i32_1 : i32 to vector<88x1xi32>
    %20 = arith.cmpi eq, %11, %19 : vector<88x1xi32>
    %21 = arith.ori %15, %20 : vector<88x1xi1>
    %c0 = arith.constant 0 : index
    %c0_2 = arith.constant 0 : index
    %22 = vector.load %arg1[%c0, %c0_2] : memref<72x128xf32, #tpu.memory_space<vmem>>, vector<9x16xf32>
    %23 = arith.truncf %22 : vector<9x16xf32> to vector<9x16xbf16>
    %c16 = arith.constant 16 : index
    %c0_3 = arith.constant 0 : index
    %24 = vector.load %arg1[%c16, %c0_3] : memref<72x128xf32, #tpu.memory_space<vmem>>, vector<48x32xf32>
    %25 = arith.truncf %24 : vector<48x32xf32> to vector<48x32xbf16>
    %c64 = arith.constant 64 : index
    %c0_4 = arith.constant 0 : index
    %26 = vector.load %arg1[%c64, %c0_4] : memref<72x128xf32, #tpu.memory_space<vmem>>, vector<1x16xf32>
    %c65 = arith.constant 65 : index
    %c0_5 = arith.constant 0 : index
    %27 = vector.load %arg1[%c65, %c0_5] : memref<72x128xf32, #tpu.memory_space<vmem>>, vector<1x32xf32>
    %c66 = arith.constant 66 : index
    %c0_6 = arith.constant 0 : index
    %28 = vector.load %arg1[%c66, %c0_6] : memref<72x128xf32, #tpu.memory_space<vmem>>, vector<1x128xf32>
    %c67 = arith.constant 67 : index
    %c0_7 = arith.constant 0 : index
    %29 = vector.load %arg1[%c67, %c0_7] : memref<72x128xf32, #tpu.memory_space<vmem>>, vector<1x4xf32>
    %c0_8 = arith.constant 0 : index
    %c0_9 = arith.constant 0 : index
    %30 = vector.load %arg2[%c0_8, %c0_9] : memref<832x128xbf16, #tpu.memory_space<vmem>>, vector<704x128xbf16>
    %c704 = arith.constant 704 : index
    %c0_10 = arith.constant 0 : index
    %31 = vector.load %arg2[%c704, %c0_10] : memref<832x128xbf16, #tpu.memory_space<vmem>>, vector<128x4xbf16>
    %c0_11 = arith.constant 0 : index
    %c0_12 = arith.constant 0 : index
    %32 = vector.load %arg0[%c0_11, %c0_12] : memref<178x3xf32, #tpu.memory_space<vmem>>, vector<176x3xf32>
    %cst = arith.constant 0.000000e+00 : f32
    %33 = vector.shape_cast %7 : vector<176x1xi1> to vector<176x1xi1>
    %34 = vector.broadcast %33 : vector<176x1xi1> to vector<176x3xi1>
    %35 = vector.broadcast %cst : f32 to vector<176x3xf32>
    %36 = arith.select %34, %35, %32 : vector<176x3xi1>, vector<176x3xf32>
    %c1 = arith.constant 1 : index
    %c0_13 = arith.constant 0 : index
    %37 = vector.load %arg0[%c1, %c0_13] : memref<178x3xf32, #tpu.memory_space<vmem>>, vector<176x3xf32>
    %c2 = arith.constant 2 : index
    %c0_14 = arith.constant 0 : index
    %38 = vector.load %arg0[%c2, %c0_14] : memref<178x3xf32, #tpu.memory_space<vmem>>, vector<176x3xf32>
    %cst_15 = arith.constant 0.000000e+00 : f32
    %39 = vector.shape_cast %10 : vector<176x1xi1> to vector<176x1xi1>
    %40 = vector.broadcast %39 : vector<176x1xi1> to vector<176x3xi1>
    %41 = vector.broadcast %cst_15 : f32 to vector<176x3xf32>
    %42 = arith.select %40, %41, %38 : vector<176x3xi1>, vector<176x3xf32>
    %43 = tpu.concatenate %36, %37, %42 in 1 : vector<176x3xf32>, vector<176x3xf32>, vector<176x3xf32> -> vector<176x9xf32>
    %44 = arith.truncf %43 : vector<176x9xf32> to vector<176x9xbf16>
    %cst_16 = arith.constant dense<0.000000e+00> : vector<176x16xf32>
    %45 = tpu.matmul %44, %23, %cst_16 {dimension_numbers = #tpu.dot_dimension_numbers<[1], [0], [0], [1], [0, 0, 1, 1], [], []>} : vector<176x9xbf16>, vector<9x16xbf16>, vector<176x16xf32> -> vector<176x16xf32>
    %46 = vector.broadcast %26 : vector<1x16xf32> to vector<176x16xf32>
    %47 = arith.addf %45, %46 : vector<176x16xf32>
    %cst_17 = arith.constant 0.000000e+00 : f32
    %48 = vector.broadcast %cst_17 : f32 to vector<176x16xf32>
    %49 = arith.maximumf %47, %48 : vector<176x16xf32>
    %c0_18 = arith.constant 0 : index
    %c0_19 = arith.constant 0 : index
    %50 = vector.load %arg4[%c0_18, %c0_19] : memref<176x16xf32, #tpu.memory_space<vmem>>, vector<176x16xf32>
    tpu.vector_store %arg4[%c0_18, %c0_19], %49 {strides = array<i32>} : memref<176x16xf32, #tpu.memory_space<vmem>>, vector<176x16xf32>,
    %c0_20 = arith.constant 0 : index
    %c0_21 = arith.constant 0 : index
    %51 = tpu.strided_load %arg4[%c0_20, %c0_21] {strides = array<i32: 2, 1>} : memref<176x16xf32, #tpu.memory_space<vmem>>, vector<88x16xf32>
    %c1_22 = arith.constant 1 : index
    %c0_23 = arith.constant 0 : index
    %52 = tpu.strided_load %arg4[%c1_22, %c0_23] {strides = array<i32: 2, 1>} : memref<176x16xf32, #tpu.memory_space<vmem>>, vector<88x16xf32>
    %53 = arith.maximumf %51, %52 : vector<88x16xf32>
    %c1_24 = arith.constant 1 : index
    %c0_25 = arith.constant 0 : index
    %54 = vector.load %arg5[%c1_24, %c0_25] : memref<90x16xf32, #tpu.memory_space<vmem>>, vector<88x16xf32>
    tpu.vector_store %arg5[%c1_24, %c0_25], %53 {strides = array<i32>} : memref<90x16xf32, #tpu.memory_space<vmem>>, vector<88x16xf32>,
    %c0_26 = arith.constant 0 : index
    %c0_27 = arith.constant 0 : index
    %55 = vector.load %arg5[%c0_26, %c0_27] : memref<90x16xf32, #tpu.memory_space<vmem>>, vector<88x16xf32>
    %cst_28 = arith.constant 0.000000e+00 : f32
    %56 = vector.shape_cast %18 : vector<88x1xi1> to vector<88x1xi1>
    %57 = vector.broadcast %56 : vector<88x1xi1> to vector<88x16xi1>
    %58 = vector.broadcast %cst_28 : f32 to vector<88x16xf32>
    %59 = arith.select %57, %58, %55 : vector<88x16xi1>, vector<88x16xf32>
    %c2_29 = arith.constant 2 : index
    %c0_30 = arith.constant 0 : index
    %60 = vector.load %arg5[%c2_29, %c0_30] : memref<90x16xf32, #tpu.memory_space<vmem>>, vector<88x16xf32>
    %cst_31 = arith.constant 0.000000e+00 : f32
    %61 = vector.shape_cast %21 : vector<88x1xi1> to vector<88x1xi1>
    %62 = vector.broadcast %61 : vector<88x1xi1> to vector<88x16xi1>
    %63 = vector.broadcast %cst_31 : f32 to vector<88x16xf32>
    %64 = arith.select %62, %63, %60 : vector<88x16xi1>, vector<88x16xf32>
    %65 = tpu.concatenate %59, %53, %64 in 1 : vector<88x16xf32>, vector<88x16xf32>, vector<88x16xf32> -> vector<88x48xf32>
    %66 = arith.truncf %65 : vector<88x48xf32> to vector<88x48xbf16>
    %cst_32 = arith.constant dense<0.000000e+00> : vector<88x32xf32>
    %67 = tpu.matmul %66, %25, %cst_32 {dimension_numbers = #tpu.dot_dimension_numbers<[1], [0], [0], [1], [0, 0, 1, 1], [], []>} : vector<88x48xbf16>, vector<48x32xbf16>, vector<88x32xf32> -> vector<88x32xf32>
    %68 = vector.broadcast %27 : vector<1x32xf32> to vector<88x32xf32>
    %69 = arith.addf %67, %68 : vector<88x32xf32>
    %cst_33 = arith.constant 0.000000e+00 : f32
    %70 = vector.broadcast %cst_33 : f32 to vector<88x32xf32>
    %71 = arith.maximumf %69, %70 : vector<88x32xf32>
    %c0_34 = arith.constant 0 : index
    %c0_35 = arith.constant 0 : index
    %72 = vector.load %arg6[%c0_34, %c0_35] : memref<88x32xf32, #tpu.memory_space<vmem>>, vector<88x32xf32>
    tpu.vector_store %arg6[%c0_34, %c0_35], %71 {strides = array<i32>} : memref<88x32xf32, #tpu.memory_space<vmem>>, vector<88x32xf32>,
    %c0_36 = arith.constant 0 : index
    %c0_37 = arith.constant 0 : index
    %73 = tpu.strided_load %arg6[%c0_36, %c0_37] {strides = array<i32: 44, 1>} : memref<88x32xf32, #tpu.memory_space<vmem>>, vector<2x32xf32>
    %c1_38 = arith.constant 1 : index
    %c0_39 = arith.constant 0 : index
    %74 = tpu.strided_load %arg6[%c1_38, %c0_39] {strides = array<i32: 44, 1>} : memref<88x32xf32, #tpu.memory_space<vmem>>, vector<2x32xf32>
    %75 = arith.maximumf %73, %74 : vector<2x32xf32>
    %c2_40 = arith.constant 2 : index
    %c0_41 = arith.constant 0 : index
    %76 = tpu.strided_load %arg6[%c2_40, %c0_41] {strides = array<i32: 44, 1>} : memref<88x32xf32, #tpu.memory_space<vmem>>, vector<2x32xf32>
    %c3 = arith.constant 3 : index
    %c0_42 = arith.constant 0 : index
    %77 = tpu.strided_load %arg6[%c3, %c0_42] {strides = array<i32: 44, 1>} : memref<88x32xf32, #tpu.memory_space<vmem>>, vector<2x32xf32>
    %78 = arith.maximumf %76, %77 : vector<2x32xf32>
    %c4 = arith.constant 4 : index
    %c0_43 = arith.constant 0 : index
    %79 = tpu.strided_load %arg6[%c4, %c0_43] {strides = array<i32: 44, 1>} : memref<88x32xf32, #tpu.memory_space<vmem>>, vector<2x32xf32>
    %c5 = arith.constant 5 : index
    %c0_44 = arith.constant 0 : index
    %80 = tpu.strided_load %arg6[%c5, %c0_44] {strides = array<i32: 44, 1>} : memref<88x32xf32, #tpu.memory_space<vmem>>, vector<2x32xf32>
    %81 = arith.maximumf %79, %80 : vector<2x32xf32>
    %c6 = arith.constant 6 : index
    %c0_45 = arith.constant 0 : index
    %82 = tpu.strided_load %arg6[%c6, %c0_45] {strides = array<i32: 44, 1>} : memref<88x32xf32, #tpu.memory_space<vmem>>, vector<2x32xf32>
    %c7 = arith.constant 7 : index
    %c0_46 = arith.constant 0 : index
    %83 = tpu.strided_load %arg6[%c7, %c0_46] {strides = array<i32: 44, 1>} : memref<88x32xf32, #tpu.memory_space<vmem>>, vector<2x32xf32>
    %84 = arith.maximumf %82, %83 : vector<2x32xf32>
    %c8 = arith.constant 8 : index
    %c0_47 = arith.constant 0 : index
    %85 = tpu.strided_load %arg6[%c8, %c0_47] {strides = array<i32: 44, 1>} : memref<88x32xf32, #tpu.memory_space<vmem>>, vector<2x32xf32>
    %c9 = arith.constant 9 : index
    %c0_48 = arith.constant 0 : index
    %86 = tpu.strided_load %arg6[%c9, %c0_48] {strides = array<i32: 44, 1>} : memref<88x32xf32, #tpu.memory_space<vmem>>, vector<2x32xf32>
    %87 = arith.maximumf %85, %86 : vector<2x32xf32>
    %c10 = arith.constant 10 : index
    %c0_49 = arith.constant 0 : index
    %88 = tpu.strided_load %arg6[%c10, %c0_49] {strides = array<i32: 44, 1>} : memref<88x32xf32, #tpu.memory_space<vmem>>, vector<2x32xf32>
    %c11 = arith.constant 11 : index
    %c0_50 = arith.constant 0 : index
    %89 = tpu.strided_load %arg6[%c11, %c0_50] {strides = array<i32: 44, 1>} : memref<88x32xf32, #tpu.memory_space<vmem>>, vector<2x32xf32>
    %90 = arith.maximumf %88, %89 : vector<2x32xf32>
    %c12 = arith.constant 12 : index
    %c0_51 = arith.constant 0 : index
    %91 = tpu.strided_load %arg6[%c12, %c0_51] {strides = array<i32: 44, 1>} : memref<88x32xf32, #tpu.memory_space<vmem>>, vector<2x32xf32>
    %c13 = arith.constant 13 : index
    %c0_52 = arith.constant 0 : index
    %92 = tpu.strided_load %arg6[%c13, %c0_52] {strides = array<i32: 44, 1>} : memref<88x32xf32, #tpu.memory_space<vmem>>, vector<2x32xf32>
    %93 = arith.maximumf %91, %92 : vector<2x32xf32>
    %c14 = arith.constant 14 : index
    %c0_53 = arith.constant 0 : index
    %94 = tpu.strided_load %arg6[%c14, %c0_53] {strides = array<i32: 44, 1>} : memref<88x32xf32, #tpu.memory_space<vmem>>, vector<2x32xf32>
    %c15 = arith.constant 15 : index
    %c0_54 = arith.constant 0 : index
    %95 = tpu.strided_load %arg6[%c15, %c0_54] {strides = array<i32: 44, 1>} : memref<88x32xf32, #tpu.memory_space<vmem>>, vector<2x32xf32>
    %96 = arith.maximumf %94, %95 : vector<2x32xf32>
    %c16_55 = arith.constant 16 : index
    %c0_56 = arith.constant 0 : index
    %97 = tpu.strided_load %arg6[%c16_55, %c0_56] {strides = array<i32: 44, 1>} : memref<88x32xf32, #tpu.memory_space<vmem>>, vector<2x32xf32>
    %c17 = arith.constant 17 : index
    %c0_57 = arith.constant 0 : index
    %98 = tpu.strided_load %arg6[%c17, %c0_57] {strides = array<i32: 44, 1>} : memref<88x32xf32, #tpu.memory_space<vmem>>, vector<2x32xf32>
    %99 = arith.maximumf %97, %98 : vector<2x32xf32>
    %c18 = arith.constant 18 : index
    %c0_58 = arith.constant 0 : index
    %100 = tpu.strided_load %arg6[%c18, %c0_58] {strides = array<i32: 44, 1>} : memref<88x32xf32, #tpu.memory_space<vmem>>, vector<2x32xf32>
    %c19 = arith.constant 19 : index
    %c0_59 = arith.constant 0 : index
    %101 = tpu.strided_load %arg6[%c19, %c0_59] {strides = array<i32: 44, 1>} : memref<88x32xf32, #tpu.memory_space<vmem>>, vector<2x32xf32>
    %102 = arith.maximumf %100, %101 : vector<2x32xf32>
    %c20 = arith.constant 20 : index
    %c0_60 = arith.constant 0 : index
    %103 = tpu.strided_load %arg6[%c20, %c0_60] {strides = array<i32: 44, 1>} : memref<88x32xf32, #tpu.memory_space<vmem>>, vector<2x32xf32>
    %c21 = arith.constant 21 : index
    %c0_61 = arith.constant 0 : index
    %104 = tpu.strided_load %arg6[%c21, %c0_61] {strides = array<i32: 44, 1>} : memref<88x32xf32, #tpu.memory_space<vmem>>, vector<2x32xf32>
    %105 = arith.maximumf %103, %104 : vector<2x32xf32>
    %c22 = arith.constant 22 : index
    %c0_62 = arith.constant 0 : index
    %106 = tpu.strided_load %arg6[%c22, %c0_62] {strides = array<i32: 44, 1>} : memref<88x32xf32, #tpu.memory_space<vmem>>, vector<2x32xf32>
    %c23 = arith.constant 23 : index
    %c0_63 = arith.constant 0 : index
    %107 = tpu.strided_load %arg6[%c23, %c0_63] {strides = array<i32: 44, 1>} : memref<88x32xf32, #tpu.memory_space<vmem>>, vector<2x32xf32>
    %108 = arith.maximumf %106, %107 : vector<2x32xf32>
    %c24 = arith.constant 24 : index
    %c0_64 = arith.constant 0 : index
    %109 = tpu.strided_load %arg6[%c24, %c0_64] {strides = array<i32: 44, 1>} : memref<88x32xf32, #tpu.memory_space<vmem>>, vector<2x32xf32>
    %c25 = arith.constant 25 : index
    %c0_65 = arith.constant 0 : index
    %110 = tpu.strided_load %arg6[%c25, %c0_65] {strides = array<i32: 44, 1>} : memref<88x32xf32, #tpu.memory_space<vmem>>, vector<2x32xf32>
    %111 = arith.maximumf %109, %110 : vector<2x32xf32>
    %c26 = arith.constant 26 : index
    %c0_66 = arith.constant 0 : index
    %112 = tpu.strided_load %arg6[%c26, %c0_66] {strides = array<i32: 44, 1>} : memref<88x32xf32, #tpu.memory_space<vmem>>, vector<2x32xf32>
    %c27 = arith.constant 27 : index
    %c0_67 = arith.constant 0 : index
    %113 = tpu.strided_load %arg6[%c27, %c0_67] {strides = array<i32: 44, 1>} : memref<88x32xf32, #tpu.memory_space<vmem>>, vector<2x32xf32>
    %114 = arith.maximumf %112, %113 : vector<2x32xf32>
    %c28 = arith.constant 28 : index
    %c0_68 = arith.constant 0 : index
    %115 = tpu.strided_load %arg6[%c28, %c0_68] {strides = array<i32: 44, 1>} : memref<88x32xf32, #tpu.memory_space<vmem>>, vector<2x32xf32>
    %c29 = arith.constant 29 : index
    %c0_69 = arith.constant 0 : index
    %116 = tpu.strided_load %arg6[%c29, %c0_69] {strides = array<i32: 44, 1>} : memref<88x32xf32, #tpu.memory_space<vmem>>, vector<2x32xf32>
    %117 = arith.maximumf %115, %116 : vector<2x32xf32>
    %c30 = arith.constant 30 : index
    %c0_70 = arith.constant 0 : index
    %118 = tpu.strided_load %arg6[%c30, %c0_70] {strides = array<i32: 44, 1>} : memref<88x32xf32, #tpu.memory_space<vmem>>, vector<2x32xf32>
    %c31 = arith.constant 31 : index
    %c0_71 = arith.constant 0 : index
    %119 = tpu.strided_load %arg6[%c31, %c0_71] {strides = array<i32: 44, 1>} : memref<88x32xf32, #tpu.memory_space<vmem>>, vector<2x32xf32>
    %120 = arith.maximumf %118, %119 : vector<2x32xf32>
    %c32 = arith.constant 32 : index
    %c0_72 = arith.constant 0 : index
    %121 = tpu.strided_load %arg6[%c32, %c0_72] {strides = array<i32: 44, 1>} : memref<88x32xf32, #tpu.memory_space<vmem>>, vector<2x32xf32>
    %c33 = arith.constant 33 : index
    %c0_73 = arith.constant 0 : index
    %122 = tpu.strided_load %arg6[%c33, %c0_73] {strides = array<i32: 44, 1>} : memref<88x32xf32, #tpu.memory_space<vmem>>, vector<2x32xf32>
    %123 = arith.maximumf %121, %122 : vector<2x32xf32>
    %c34 = arith.constant 34 : index
    %c0_74 = arith.constant 0 : index
    %124 = tpu.strided_load %arg6[%c34, %c0_74] {strides = array<i32: 44, 1>} : memref<88x32xf32, #tpu.memory_space<vmem>>, vector<2x32xf32>
    %c35 = arith.constant 35 : index
    %c0_75 = arith.constant 0 : index
    %125 = tpu.strided_load %arg6[%c35, %c0_75] {strides = array<i32: 44, 1>} : memref<88x32xf32, #tpu.memory_space<vmem>>, vector<2x32xf32>
    %126 = arith.maximumf %124, %125 : vector<2x32xf32>
    %c36 = arith.constant 36 : index
    %c0_76 = arith.constant 0 : index
    %127 = tpu.strided_load %arg6[%c36, %c0_76] {strides = array<i32: 44, 1>} : memref<88x32xf32, #tpu.memory_space<vmem>>, vector<2x32xf32>
    %c37 = arith.constant 37 : index
    %c0_77 = arith.constant 0 : index
    %128 = tpu.strided_load %arg6[%c37, %c0_77] {strides = array<i32: 44, 1>} : memref<88x32xf32, #tpu.memory_space<vmem>>, vector<2x32xf32>
    %129 = arith.maximumf %127, %128 : vector<2x32xf32>
    %c38 = arith.constant 38 : index
    %c0_78 = arith.constant 0 : index
    %130 = tpu.strided_load %arg6[%c38, %c0_78] {strides = array<i32: 44, 1>} : memref<88x32xf32, #tpu.memory_space<vmem>>, vector<2x32xf32>
    %c39 = arith.constant 39 : index
    %c0_79 = arith.constant 0 : index
    %131 = tpu.strided_load %arg6[%c39, %c0_79] {strides = array<i32: 44, 1>} : memref<88x32xf32, #tpu.memory_space<vmem>>, vector<2x32xf32>
    %132 = arith.maximumf %130, %131 : vector<2x32xf32>
    %c40 = arith.constant 40 : index
    %c0_80 = arith.constant 0 : index
    %133 = tpu.strided_load %arg6[%c40, %c0_80] {strides = array<i32: 44, 1>} : memref<88x32xf32, #tpu.memory_space<vmem>>, vector<2x32xf32>
    %c41 = arith.constant 41 : index
    %c0_81 = arith.constant 0 : index
    %134 = tpu.strided_load %arg6[%c41, %c0_81] {strides = array<i32: 44, 1>} : memref<88x32xf32, #tpu.memory_space<vmem>>, vector<2x32xf32>
    %135 = arith.maximumf %133, %134 : vector<2x32xf32>
    %c42 = arith.constant 42 : index
    %c0_82 = arith.constant 0 : index
    %136 = tpu.strided_load %arg6[%c42, %c0_82] {strides = array<i32: 44, 1>} : memref<88x32xf32, #tpu.memory_space<vmem>>, vector<2x32xf32>
    %c43 = arith.constant 43 : index
    %c0_83 = arith.constant 0 : index
    %137 = tpu.strided_load %arg6[%c43, %c0_83] {strides = array<i32: 44, 1>} : memref<88x32xf32, #tpu.memory_space<vmem>>, vector<2x32xf32>
    %138 = arith.maximumf %136, %137 : vector<2x32xf32>
    %139 = tpu.concatenate %75, %78, %81, %84, %87, %90, %93, %96, %99, %102, %105, %108, %111, %114, %117, %120 in 1 : vector<2x32xf32>, vector<2x32xf32>, vector<2x32xf32>, vector<2x32xf32>, vector<2x32xf32>, vector<2x32xf32>, vector<2x32xf32>, vector<2x32xf32>, vector<2x32xf32>, vector<2x32xf32>, vector<2x32xf32>, vector<2x32xf32>, vector<2x32xf32>, vector<2x32xf32>, vector<2x32xf32>, vector<2x32xf32> -> vector<2x512xf32>
    %140 = tpu.concatenate %123, %126, %129, %132, %135, %138 in 1 : vector<2x32xf32>, vector<2x32xf32>, vector<2x32xf32>, vector<2x32xf32>, vector<2x32xf32>, vector<2x32xf32> -> vector<2x192xf32>
    %141 = tpu.concatenate %139, %140 in 1 : vector<2x512xf32>, vector<2x192xf32> -> vector<2x704xf32>
    %142 = arith.truncf %141 : vector<2x704xf32> to vector<2x704xbf16>
    %cst_84 = arith.constant dense<0.000000e+00> : vector<2x128xf32>
    %143 = tpu.matmul %142, %30, %cst_84 {dimension_numbers = #tpu.dot_dimension_numbers<[1], [0], [0], [1], [0, 0, 1, 1], [], []>} : vector<2x704xbf16>, vector<704x128xbf16>, vector<2x128xf32> -> vector<2x128xf32>
    %144 = vector.broadcast %28 : vector<1x128xf32> to vector<2x128xf32>
    %145 = arith.addf %143, %144 : vector<2x128xf32>
    %cst_85 = arith.constant 0.000000e+00 : f32
    %146 = vector.broadcast %cst_85 : f32 to vector<2x128xf32>
    %147 = arith.maximumf %145, %146 : vector<2x128xf32>
    %148 = arith.truncf %147 : vector<2x128xf32> to vector<2x128xbf16>
    %cst_86 = arith.constant dense<0.000000e+00> : vector<2x4xf32>
    %149 = tpu.matmul %148, %31, %cst_86 {dimension_numbers = #tpu.dot_dimension_numbers<[1], [0], [0], [1], [0, 0, 1, 1], [], []>} : vector<2x128xbf16>, vector<128x4xbf16>, vector<2x4xf32> -> vector<2x4xf32>
    %150 = vector.broadcast %29 : vector<1x4xf32> to vector<2x4xf32>
    %151 = arith.addf %149, %150 : vector<2x4xf32>
    %c0_87 = arith.constant 0 : index
    %c0_88 = arith.constant 0 : index
    %152 = vector.load %arg3[%c0_87, %c0_88] : memref<2x4xf32, #tpu.memory_space<vmem>>, vector<2x4xf32>
    tpu.vector_store %arg3[%c0_87, %c0_88], %151 {strides = array<i32>} : memref<2x4xf32, #tpu.memory_space<vmem>>, vector<2x4xf32>,
    return
  }
}

</mosaic_0001>

<llo_original>
// kernel: lidar_cnn_forward.1
$region0: #{lidar_cnn_forward.1}
  #allocation0 [shape = 'u32[]', space=smem, size = 0x4, offset = 0x4, fixed_abs, tag = 'smem constant byte address 0x4 - core index']
  #allocation1 [shape = 'u32[144,128]{1,0:T(1,128)}', space=vmem, size = 0x12000, scoped, tag = 'internal scratch']
  #allocation2 [shape = 'f32[176,16]{1,0:T(8,128)}', space=vmem, size = 0x16000, scoped, tag = 'scratch operand']
  #allocation3 [shape = 'f32[90,16]{1,0:T(8,128)}', space=vmem, size = 0xc000, scoped, tag = 'scratch operand']
  #allocation4 [shape = 'f32[88,32]{1,0:T(8,128)}', space=vmem, size = 0xb000, scoped, tag = 'scratch operand']
  %s0 = inlined_call_operand.vmem [shape: f32[178,3], index: 0, kind: input, shape index: {}]
  %s1 = inlined_call_operand.vmem [shape: f32[72,128], index: 1, kind: input, shape index: {}]
  %s2 = inlined_call_operand.vmem [shape: bf16[832,128], index: 2, kind: input, shape index: {}]
  %s3 = inlined_call_operand.hbm [shape: f32[2,4], index: 3, kind: output, shape index: {}]
  %s4 = sld [smem:[#allocation0]]
  $region22: #{lidar_cnn_forward.1} parent=0
    _
  %s6 = ssub.s32 1, %s4
  %s7 = scalar_select 0, %s6, %s4
  $region1: #{lidar_cnn_forward.1} parent=0
    #allocation5 [shape = 'u8[1024]{0}', space=vmem, size = 0x400, scoped, tag = 'output window, operand 0, single buffered']
    #allocation6 [shape = 's32[1]{0}', space=sflag, size = 0x4, scoped, tag = 'scoped memory for lidar_cnn_forward.1']
    %8 = vsyncpa [#allocation6], 0
    // Predicated region
    $region2: #{lidar_cnn_forward.1} parent=1 // pred_check
      _
    $region3: #{lidar_cnn_forward.1} parent=1 // pred_check_branch
      %10 = sbr.rel (0) target = $region5
    $region4: #{lidar_cnn_forward.1} parent=1 // pred_region
      _
    $region5: #{lidar_cnn_forward.1} parent=1 // pred_fallthru
      _
    // Predicated region
    $region6: #{lidar_cnn_forward.1} parent=1 // pred_check
      _
    $region7: #{lidar_cnn_forward.1} parent=1 // pred_check_branch
      %12 = sbr.rel (0) target = $region9
    $region8: #{lidar_cnn_forward.1} parent=1 // pred_region
      _
    $region9: #{lidar_cnn_forward.1} parent=1 // pred_fallthru
      _
    // Predicated region
    $region10: #{lidar_cnn_forward.1} parent=1 // pred_check
      _
    $region11: #{lidar_cnn_forward.1} parent=1 // pred_check_branch
      %14 = sbr.rel (0) target = $region13
    $region12: #{lidar_cnn_forward.1} parent=1 // pred_region
      _
    $region13: #{lidar_cnn_forward.1} parent=1 // pred_fallthru
      _
    %v16 = vlaneseq
    %v17 = vshrl.u32 %v16, 7
    %v18 = vadd.s32 %v17, 8
    %v19 = vadd.s32 %v17, 16
    %v20 = vadd.s32 %v17, 24
    %v21 = vadd.s32 %v17, 32
    %v22 = vadd.s32 %v17, 40
    %v23 = vadd.s32 %v17, 48
    %v24 = vadd.s32 %v17, 56
    %v25 = vadd.s32 %v17, 64
    %v26 = vadd.s32 %v17, 72
    %v27 = vadd.s32 %v17, 80
    %v28 = vadd.s32 %v17, 88
    %v29 = vadd.s32 %v17, 96
    %v30 = vadd.s32 %v17, 104
    %v31 = vadd.s32 %v17, 112
    %v32 = vadd.s32 %v17, 120
    %v33 = vadd.s32 %v17, 128
    %v34 = vadd.s32 %v17, 136
    %v35 = vadd.s32 %v17, 144
    %v36 = vadd.s32 %v17, 152
    %v37 = vadd.s32 %v17, 160
    %v38 = vadd.s32 %v17, 168
    %vm39 = vcmp.eq.s32.totalorder %v17, 0
    %vm40 = vcmp.eq.s32.totalorder %v18, 0
    %vm41 = vcmp.eq.s32.totalorder %v19, 0
    %vm42 = vcmp.eq.s32.totalorder %v20, 0
    %vm43 = vcmp.eq.s32.totalorder %v21, 0
    %vm44 = vcmp.eq.s32.totalorder %v22, 0
    %vm45 = vcmp.eq.s32.totalorder %v23, 0
    %vm46 = vcmp.eq.s32.totalorder %v24, 0
    %vm47 = vcmp.eq.s32.totalorder %v25, 0
    %vm48 = vcmp.eq.s32.totalorder %v26, 0
    %vm49 = vcmp.eq.s32.totalorder %v27, 0
    %vm50 = vcmp.eq.s32.totalorder %v28, 0
    %vm51 = vcmp.eq.s32.totalorder %v29, 0
    %vm52 = vcmp.eq.s32.totalorder %v30, 0
    %vm53 = vcmp.eq.s32.totalorder %v31, 0
    %vm54 = vcmp.eq.s32.totalorder %v32, 0
    %vm55 = vcmp.eq.s32.totalorder %v33, 0
    %vm56 = vcmp.eq.s32.totalorder %v34, 0
    %vm57 = vcmp.eq.s32.totalorder %v35, 0
    %vm58 = vcmp.eq.s32.totalorder %v36, 0
    %vm59 = vcmp.eq.s32.totalorder %v37, 0
    %vm60 = vcmp.eq.s32.totalorder %v38, 0
    %vm61 = vcmp.eq.s32.totalorder %v17, 87
    %vm62 = vcmp.eq.s32.totalorder %v18, 87
    %vm63 = vcmp.eq.s32.totalorder %v19, 87
    %vm64 = vcmp.eq.s32.totalorder %v20, 87
    %vm65 = vcmp.eq.s32.totalorder %v21, 87
    %vm66 = vcmp.eq.s32.totalorder %v22, 87
    %vm67 = vcmp.eq.s32.totalorder %v23, 87
    %vm68 = vcmp.eq.s32.totalorder %v24, 87
    %vm69 = vcmp.eq.s32.totalorder %v25, 87
    %vm70 = vcmp.eq.s32.totalorder %v26, 87
    %vm71 = vcmp.eq.s32.totalorder %v27, 87
    %vm72 = vcmp.eq.s32.totalorder %v28, 87
    %vm73 = vcmp.eq.s32.totalorder %v29, 87
    %vm74 = vcmp.eq.s32.totalorder %v30, 87
    %vm75 = vcmp.eq.s32.totalorder %v31, 87
    %vm76 = vcmp.eq.s32.totalorder %v32, 87
    %vm77 = vcmp.eq.s32.totalorder %v33, 87
    %vm78 = vcmp.eq.s32.totalorder %v34, 87
    %vm79 = vcmp.eq.s32.totalorder %v35, 87
    %vm80 = vcmp.eq.s32.totalorder %v36, 87
    %vm81 = vcmp.eq.s32.totalorder %v37, 87
    %vm82 = vcmp.eq.s32.totalorder %v38, 87
    %vm83 = vcmp.eq.s32.totalorder %v17, 88
    %vm84 = vcmp.eq.s32.totalorder %v18, 88
    %vm85 = vcmp.eq.s32.totalorder %v19, 88
    %vm86 = vcmp.eq.s32.totalorder %v20, 88
    %vm87 = vcmp.eq.s32.totalorder %v21, 88
    %vm88 = vcmp.eq.s32.totalorder %v22, 88
    %vm89 = vcmp.eq.s32.totalorder %v23, 88
    %vm90 = vcmp.eq.s32.totalorder %v24, 88
    %vm91 = vcmp.eq.s32.totalorder %v25, 88
    %vm92 = vcmp.eq.s32.totalorder %v26, 88
    %vm93 = vcmp.eq.s32.totalorder %v27, 88
    %vm94 = vcmp.eq.s32.totalorder %v28, 88
    %vm95 = vcmp.eq.s32.totalorder %v29, 88
    %vm96 = vcmp.eq.s32.totalorder %v30, 88
    %vm97 = vcmp.eq.s32.totalorder %v31, 88
    %vm98 = vcmp.eq.s32.totalorder %v32, 88
    %vm99 = vcmp.eq.s32.totalorder %v33, 88
    %vm100 = vcmp.eq.s32.totalorder %v34, 88
    %vm101 = vcmp.eq.s32.totalorder %v35, 88
    %vm102 = vcmp.eq.s32.totalorder %v36, 88
    %vm103 = vcmp.eq.s32.totalorder %v37, 88
    %vm104 = vcmp.eq.s32.totalorder %v38, 88
    %vm105 = vmor %vm39, %vm83
    %vm106 = vmor %vm40, %vm84
    %vm107 = vmor %vm41, %vm85
    %vm108 = vmor %vm42, %vm86
    %vm109 = vmor %vm43, %vm87
    %vm110 = vmor %vm44, %vm88
    %vm111 = vmor %vm45, %vm89
    %vm112 = vmor %vm46, %vm90
    %vm113 = vmor %vm47, %vm91
    %vm114 = vmor %vm48, %vm92
    %vm115 = vmor %vm49, %vm93
    %vm116 = vmor %vm50, %vm94
    %vm117 = vmor %vm51, %vm95
    %vm118 = vmor %vm52, %vm96
    %vm119 = vmor %vm53, %vm97
    %vm120 = vmor %vm54, %vm98
    %vm121 = vmor %vm55, %vm99
    %vm122 = vmor %vm56, %vm100
    %vm123 = vmor %vm57, %vm101
    %vm124 = vmor %vm58, %vm102
    %vm125 = vmor %vm59, %vm103
    %vm126 = vmor %vm60, %vm104
    %vm127 = vcmp.eq.s32.totalorder %v17, 175
    %vm128 = vcmp.eq.s32.totalorder %v18, 175
    %vm129 = vcmp.eq.s32.totalorder %v19, 175
    %vm130 = vcmp.eq.s32.totalorder %v20, 175
    %vm131 = vcmp.eq.s32.totalorder %v21, 175
    %vm132 = vcmp.eq.s32.totalorder %v22, 175
    %vm133 = vcmp.eq.s32.totalorder %v23, 175
    %vm134 = vcmp.eq.s32.totalorder %v24, 175
    %vm135 = vcmp.eq.s32.totalorder %v25, 175
    %vm136 = vcmp.eq.s32.totalorder %v26, 175
    %vm137 = vcmp.eq.s32.totalorder %v27, 175
    %vm138 = vcmp.eq.s32.totalorder %v28, 175
    %vm139 = vcmp.eq.s32.totalorder %v29, 175
    %vm140 = vcmp.eq.s32.totalorder %v30, 175
    %vm141 = vcmp.eq.s32.totalorder %v31, 175
    %vm142 = vcmp.eq.s32.totalorder %v32, 175
    %vm143 = vcmp.eq.s32.totalorder %v33, 175
    %vm144 = vcmp.eq.s32.totalorder %v34, 175
    %vm145 = vcmp.eq.s32.totalorder %v35, 175
    %vm146 = vcmp.eq.s32.totalorder %v36, 175
    %vm147 = vcmp.eq.s32.totalorder %v37, 175
    %vm148 = vcmp.eq.s32.totalorder %v38, 175
    %vm149 = vmor %vm61, %vm127
    %vm150 = vmor %vm62, %vm128
    %vm151 = vmor %vm63, %vm129
    %vm152 = vmor %vm64, %vm130
    %vm153 = vmor %vm65, %vm131
    %vm154 = vmor %vm66, %vm132
    %vm155 = vmor %vm67, %vm133
    %vm156 = vmor %vm68, %vm134
    %vm157 = vmor %vm69, %vm135
    %vm158 = vmor %vm70, %vm136
    %vm159 = vmor %vm71, %vm137
    %vm160 = vmor %vm72, %vm138
    %vm161 = vmor %vm73, %vm139
    %vm162 = vmor %vm74, %vm140
    %vm163 = vmor %vm75, %vm141
    %vm164 = vmor %vm76, %vm142
    %vm165 = vmor %vm77, %vm143
    %vm166 = vmor %vm78, %vm144
    %vm167 = vmor %vm79, %vm145
    %vm168 = vmor %vm80, %vm146
    %vm169 = vmor %vm81, %vm147
    %vm170 = vmor %vm82, %vm148
    %vm171 = vcmp.eq.s32.totalorder %v17, 43
    %vm172 = vcmp.eq.s32.totalorder %v18, 43
    %vm173 = vcmp.eq.s32.totalorder %v19, 43
    %vm174 = vcmp.eq.s32.totalorder %v20, 43
    %vm175 = vcmp.eq.s32.totalorder %v21, 43
    %vm176 = vcmp.eq.s32.totalorder %v22, 43
    %vm177 = vcmp.eq.s32.totalorder %v23, 43
    %vm178 = vcmp.eq.s32.totalorder %v24, 43
    %vm179 = vcmp.eq.s32.totalorder %v25, 43
    %vm180 = vcmp.eq.s32.totalorder %v26, 43
    %vm181 = vcmp.eq.s32.totalorder %v27, 43
    %vm182 = vcmp.eq.s32.totalorder %v17, 44
    %vm183 = vcmp.eq.s32.totalorder %v18, 44
    %vm184 = vcmp.eq.s32.totalorder %v19, 44
    %vm185 = vcmp.eq.s32.totalorder %v20, 44
    %vm186 = vcmp.eq.s32.totalorder %v21, 44
    %vm187 = vcmp.eq.s32.totalorder %v22, 44
    %vm188 = vcmp.eq.s32.totalorder %v23, 44
    %vm189 = vcmp.eq.s32.totalorder %v24, 44
    %vm190 = vcmp.eq.s32.totalorder %v25, 44
    %vm191 = vcmp.eq.s32.totalorder %v26, 44
    %vm192 = vcmp.eq.s32.totalorder %v27, 44
    %vm193 = vmor %vm39, %vm182
    %vm194 = vmor %vm40, %vm183
    %vm195 = vmor %vm41, %vm184
    %vm196 = vmor %vm42, %vm185
    %vm197 = vmor %vm43, %vm186
    %vm198 = vmor %vm44, %vm187
    %vm199 = vmor %vm45, %vm188
    %vm200 = vmor %vm46, %vm189
    %vm201 = vmor %vm47, %vm190
    %vm202 = vmor %vm48, %vm191
    %vm203 = vmor %vm49, %vm192
    %vm204 = vmor %vm171, %vm61
    %vm205 = vmor %vm172, %vm62
    %vm206 = vmor %vm173, %vm63
    %vm207 = vmor %vm174, %vm64
    %vm208 = vmor %vm175, %vm65
    %vm209 = vmor %vm176, %vm66
    %vm210 = vmor %vm177, %vm67
    %vm211 = vmor %vm178, %vm68
    %vm212 = vmor %vm179, %vm69
    %vm213 = vmor %vm180, %vm70
    %vm214 = vmor %vm181, %vm71
    %v215 = vld [vmem:[%s1] sm:$0xff]
    %v216 = vld [vmem:[%s1 + $0x8] sm:$0x1]
    %v217 = vpack.c.bf16 %v216, %v215
    %v218 = vld [vmem:[%s1 + $0x10] sm:$0xff]
    %v219 = vld [vmem:[%s1 + $0x18] sm:$0xff]
    %v220 = vld [vmem:[%s1 + $0x20] sm:$0xff]
    %v221 = vld [vmem:[%s1 + $0x28] sm:$0xff]
    %v222 = vld [vmem:[%s1 + $0x30] sm:$0xff]
    %v223 = vld [vmem:[%s1 + $0x38] sm:$0xff]
    %v224 = vpack.c.bf16 %v219, %v218
    %v225 = vpack.c.bf16 %v221, %v220
    %v226 = vpack.c.bf16 %v223, %v222
    %v227 = vld [vmem:[%s1 + $0x40] sm:$0x1]
    %v228 = vld [vmem:[%s1 + $0x41] sm:$0x1]
    %v229 = vld [vmem:[%s1 + $0x42] sm:$0x1]
    %v230 = vld [vmem:[%s1 + $0x43] sm:$0x1]
    %v231 = vld [vmem:[%s2] sm:$0xf]
    %v232 = vld [vmem:[%s2 + $0x4] sm:$0xf]
    %v233 = vld [vmem:[%s2 + $0x8] sm:$0xf]
    %v234 = vld [vmem:[%s2 + $0xc] sm:$0xf]
    %v235 = vld [vmem:[%s2 + $0x10] sm:$0xf]
    %v236 = vld [vmem:[%s2 + $0x14] sm:$0xf]
    %v237 = vld [vmem:[%s2 + $0x18] sm:$0xf]
    %v238 = vld [vmem:[%s2 + $0x1c] sm:$0xf]
    %v239 = vld [vmem:[%s2 + $0x20] sm:$0xf]
    %v240 = vld [vmem:[%s2 + $0x24] sm:$0xf]
    %v241 = vld [vmem:[%s2 + $0x28] sm:$0xf]
    %v242 = vld [vmem:[%s2 + $0x2c] sm:$0xf]
    %v243 = vld [vmem:[%s2 + $0x30] sm:$0xf]
    %v244 = vld [vmem:[%s2 + $0x34] sm:$0xf]
    %v245 = vld [vmem:[%s2 + $0x38] sm:$0xf]
    %v246 = vld [vmem:[%s2 + $0x3c] sm:$0xf]
    %v247 = vld [vmem:[%s2 + $0x40] sm:$0xf]
    %v248 = vld [vmem:[%s2 + $0x44] sm:$0xf]
    %v249 = vld [vmem:[%s2 + $0x48] sm:$0xf]
    %v250 = vld [vmem:[%s2 + $0x4c] sm:$0xf]
    %v251 = vld [vmem:[%s2 + $0x50] sm:$0xf]
    %v252 = vld [vmem:[%s2 + $0x54] sm:$0xf]
    %v253 = vld [vmem:[%s2 + $0x58] sm:$0xf]
    %v254 = vld [vmem:[%s2 + $0x5c] sm:$0xf]
    %v255 = vld [vmem:[%s2 + $0x60] sm:$0xf]
    %v256 = vld [vmem:[%s2 + $0x64] sm:$0xf]
    %v257 = vld [vmem:[%s2 + $0x68] sm:$0xf]
    %v258 = vld [vmem:[%s2 + $0x6c] sm:$0xf]
    %v259 = vld [vmem:[%s2 + $0x70] sm:$0xf]
    %v260 = vld [vmem:[%s2 + $0x74] sm:$0xf]
    %v261 = vld [vmem:[%s2 + $0x78] sm:$0xf]
    %v262 = vld [vmem:[%s2 + $0x7c] sm:$0xf]
    %v263 = vld [vmem:[%s2 + $0x80] sm:$0xf]
    %v264 = vld [vmem:[%s2 + $0x84] sm:$0xf]
    %v265 = vld [vmem:[%s2 + $0x88] sm:$0xf]
    %v266 = vld [vmem:[%s2 + $0x8c] sm:$0xf]
    %v267 = vld [vmem:[%s2 + $0x90] sm:$0xf]
    %v268 = vld [vmem:[%s2 + $0x94] sm:$0xf]
    %v269 = vld [vmem:[%s2 + $0x98] sm:$0xf]
    %v270 = vld [vmem:[%s2 + $0x9c] sm:$0xf]
    %v271 = vld [vmem:[%s2 + $0xa0] sm:$0xf]
    %v272 = vld [vmem:[%s2 + $0xa4] sm:$0xf]
    %v273 = vld [vmem:[%s2 + $0xa8] sm:$0xf]
    %v274 = vld [vmem:[%s2 + $0xac] sm:$0xf]
    %v275 = vld [vmem:[%s2 + $0xb0] sm:$0xf]
    %v276 = vld [vmem:[%s2 + $0xb4] sm:$0xf]
    %v277 = vld [vmem:[%s2 + $0xb8] sm:$0xf]
    %v278 = vld [vmem:[%s2 + $0xbc] sm:$0xf]
    %v279 = vld [vmem:[%s2 + $0xc0] sm:$0xf]
    %v280 = vld [vmem:[%s2 + $0xc4] sm:$0xf]
    %v281 = vld [vmem:[%s2 + $0xc8] sm:$0xf]
    %v282 = vld [vmem:[%s2 + $0xcc] sm:$0xf]
    %v283 = vld [vmem:[%s2 + $0xd0] sm:$0xf]
    %v284 = vld [vmem:[%s2 + $0xd4] sm:$0xf]
    %v285 = vld [vmem:[%s2 + $0xd8] sm:$0xf]
    %v286 = vld [vmem:[%s2 + $0xdc] sm:$0xf]
    %v287 = vld [vmem:[%s2 + $0xe0] sm:$0xf]
    %v288 = vld [vmem:[%s2 + $0xe4] sm:$0xf]
    %v289 = vld [vmem:[%s2 + $0xe8] sm:$0xf]
    %v290 = vld [vmem:[%s2 + $0xec] sm:$0xf]
    %v291 = vld [vmem:[%s2 + $0xf0] sm:$0xf]
    %v292 = vld [vmem:[%s2 + $0xf4] sm:$0xf]
    %v293 = vld [vmem:[%s2 + $0xf8] sm:$0xf]
    %v294 = vld [vmem:[%s2 + $0xfc] sm:$0xf]
    %v295 = vld [vmem:[%s2 + $0x100] sm:$0xf]
    %v296 = vld [vmem:[%s2 + $0x104] sm:$0xf]
    %v297 = vld [vmem:[%s2 + $0x108] sm:$0xf]
    %v298 = vld [vmem:[%s2 + $0x10c] sm:$0xf]
    %v299 = vld [vmem:[%s2 + $0x110] sm:$0xf]
    %v300 = vld [vmem:[%s2 + $0x114] sm:$0xf]
    %v301 = vld [vmem:[%s2 + $0x118] sm:$0xf]
    %v302 = vld [vmem:[%s2 + $0x11c] sm:$0xf]
    %v303 = vld [vmem:[%s2 + $0x120] sm:$0xf]
    %v304 = vld [vmem:[%s2 + $0x124] sm:$0xf]
    %v305 = vld [vmem:[%s2 + $0x128] sm:$0xf]
    %v306 = vld [vmem:[%s2 + $0x12c] sm:$0xf]
    %v307 = vld [vmem:[%s2 + $0x130] sm:$0xf]
    %v308 = vld [vmem:[%s2 + $0x134] sm:$0xf]
    %v309 = vld [vmem:[%s2 + $0x138] sm:$0xf]
    %v310 = vld [vmem:[%s2 + $0x13c] sm:$0xf]
    %v311 = vld [vmem:[%s2 + $0x140] sm:$0xf]
    %v312 = vld [vmem:[%s2 + $0x144] sm:$0xf]
    %v313 = vld [vmem:[%s2 + $0x148] sm:$0xf]
    %v314 = vld [vmem:[%s2 + $0x14c] sm:$0xf]
    %v315 = vld [vmem:[%s2 + $0x150] sm:$0xf]
    %v316 = vld [vmem:[%s2 + $0x154] sm:$0xf]
    %v317 = vld [vmem:[%s2 + $0x158] sm:$0xf]
    %v318 = vld [vmem:[%s2 + $0x15c] sm:$0xf]
    %v319 = vld [vmem:[%s2 + $0x160] sm:$0xf]
    %v320 = vld [vmem:[%s2 + $0x164] sm:$0xf]
    %v321 = vld [vmem:[%s2 + $0x168] sm:$0xf]
    %v322 = vld [vmem:[%s2 + $0x16c] sm:$0xf]
    %v323 = vld [vmem:[%s2 + $0x170] sm:$0xf]
    %v324 = vld [vmem:[%s2 + $0x174] sm:$0xf]
    %v325 = vld [vmem:[%s2 + $0x178] sm:$0xf]
    %v326 = vld [vmem:[%s2 + $0x17c] sm:$0xf]
    %v327 = vld [vmem:[%s2 + $0x180] sm:$0xf]
    %v328 = vld [vmem:[%s2 + $0x184] sm:$0xf]
    %v329 = vld [vmem:[%s2 + $0x188] sm:$0xf]
    %v330 = vld [vmem:[%s2 + $0x18c] sm:$0xf]
    %v331 = vld [vmem:[%s2 + $0x190] sm:$0xf]
    %v332 = vld [vmem:[%s2 + $0x194] sm:$0xf]
    %v333 = vld [vmem:[%s2 + $0x198] sm:$0xf]
    %v334 = vld [vmem:[%s2 + $0x19c] sm:$0xf]
    %v335 = vld [vmem:[%s0] sm:$0xff]
    %v336 = vld [vmem:[%s0 + $0x8] sm:$0xff]
    %v337 = vld [vmem:[%s0 + $0x10] sm:$0xff]
    %v338 = vld [vmem:[%s0 + $0x18] sm:$0xff]
    %v339 = vld [vmem:[%s0 + $0x20] sm:$0xff]
    %v340 = vld [vmem:[%s0 + $0x28] sm:$0xff]
    %v341 = vld [vmem:[%s0 + $0x30] sm:$0xff]
    %v342 = vld [vmem:[%s0 + $0x38] sm:$0xff]
    %v343 = vld [vmem:[%s0 + $0x40] sm:$0xff]
    %v344 = vld [vmem:[%s0 + $0x48] sm:$0xff]
    %v345 = vld [vmem:[%s0 + $0x50] sm:$0xff]
    %v346 = vld [vmem:[%s0 + $0x58] sm:$0xff]
    %v347 = vld [vmem:[%s0 + $0x60] sm:$0xff]
    %v348 = vld [vmem:[%s0 + $0x68] sm:$0xff]
    %v349 = vld [vmem:[%s0 + $0x70] sm:$0xff]
    %v350 = vld [vmem:[%s0 + $0x78] sm:$0xff]
    %v351 = vld [vmem:[%s0 + $0x80] sm:$0xff]
    %v352 = vld [vmem:[%s0 + $0x88] sm:$0xff]
    %v353 = vld [vmem:[%s0 + $0x90] sm:$0xff]
    %v354 = vld [vmem:[%s0 + $0x98] sm:$0xff]
    %v355 = vld [vmem:[%s0 + $0xa0] sm:$0xff]
    %v356 = vld [vmem:[%s0 + $0xa8] sm:$0xff]
    %v357 = vsel %vm105, 1, 0
    %v358 = vsel %vm106, 1, 0
    %v359 = vsel %vm107, 1, 0
    %v360 = vsel %vm108, 1, 0
    %v361 = vsel %vm109, 1, 0
    %v362 = vsel %vm110, 1, 0
    %v363 = vsel %vm111, 1, 0
    %v364 = vsel %vm112, 1, 0
    %v365 = vsel %vm113, 1, 0
    %v366 = vsel %vm114, 1, 0
    %v367 = vsel %vm115, 1, 0
    %v368 = vsel %vm116, 1, 0
    %v369 = vsel %vm117, 1, 0
    %v370 = vsel %vm118, 1, 0
    %v371 = vsel %vm119, 1, 0
    %v372 = vsel %vm120, 1, 0
    %v373 = vsel %vm121, 1, 0
    %v374 = vsel %vm122, 1, 0
    %v375 = vsel %vm123, 1, 0
    %v376 = vsel %vm124, 1, 0
    %v377 = vsel %vm125, 1, 0
    %v378 = vsel %vm126, 1, 0
    %vm379 = vcmp.eq.s32.totalorder %v357, 1
    %vm380 = vcmp.eq.s32.totalorder %v358, 1
    %vm381 = vcmp.eq.s32.totalorder %v359, 1
    %vm382 = vcmp.eq.s32.totalorder %v360, 1
    %vm383 = vcmp.eq.s32.totalorder %v361, 1
    %vm384 = vcmp.eq.s32.totalorder %v362, 1
    %vm385 = vcmp.eq.s32.totalorder %v363, 1
    %vm386 = vcmp.eq.s32.totalorder %v364, 1
    %vm387 = vcmp.eq.s32.totalorder %v365, 1
    %vm388 = vcmp.eq.s32.totalorder %v366, 1
    %vm389 = vcmp.eq.s32.totalorder %v367, 1
    %vm390 = vcmp.eq.s32.totalorder %v368, 1
    %vm391 = vcmp.eq.s32.totalorder %v369, 1
    %vm392 = vcmp.eq.s32.totalorder %v370, 1
    %vm393 = vcmp.eq.s32.totalorder %v371, 1
    %vm394 = vcmp.eq.s32.totalorder %v372, 1
    %vm395 = vcmp.eq.s32.totalorder %v373, 1
    %vm396 = vcmp.eq.s32.totalorder %v374, 1
    %vm397 = vcmp.eq.s32.totalorder %v375, 1
    %vm398 = vcmp.eq.s32.totalorder %v376, 1
    %vm399 = vcmp.eq.s32.totalorder %v377, 1
    %vm400 = vcmp.eq.s32.totalorder %v378, 1
    %v401 = vsel %vm379, 0.0, %v335
    %v402 = vsel %vm380, 0.0, %v336
    %v403 = vsel %vm381, 0.0, %v337
    %v404 = vsel %vm382, 0.0, %v338
    %v405 = vsel %vm383, 0.0, %v339
    %v406 = vsel %vm384, 0.0, %v340
    %v407 = vsel %vm385, 0.0, %v341
    %v408 = vsel %vm386, 0.0, %v342
    %v409 = vsel %vm387, 0.0, %v343
    %v410 = vsel %vm388, 0.0, %v344
    %v411 = vsel %vm389, 0.0, %v345
    %v412 = vsel %vm390, 0.0, %v346
    %v413 = vsel %vm391, 0.0, %v347
    %v414 = vsel %vm392, 0.0, %v348
    %v415 = vsel %vm393, 0.0, %v349
    %v416 = vsel %vm394, 0.0, %v350
    %v417 = vsel %vm395, 0.0, %v351
    %v418 = vsel %vm396, 0.0, %v352
    %v419 = vsel %vm397, 0.0, %v353
    %v420 = vsel %vm398, 0.0, %v354
    %v421 = vsel %vm399, 0.0, %v355
    %v422 = vsel %vm400, 0.0, %v356
    %v423 = vld [vmem:[%s0 + $0x1] sm:$0xff]
    %v424 = vld [vmem:[%s0 + $0x9] sm:$0xff]
    %v425 = vld [vmem:[%s0 + $0x11] sm:$0xff]
    %v426 = vld [vmem:[%s0 + $0x19] sm:$0xff]
    %v427 = vld [vmem:[%s0 + $0x21] sm:$0xff]
    %v428 = vld [vmem:[%s0 + $0x29] sm:$0xff]
    %v429 = vld [vmem:[%s0 + $0x31] sm:$0xff]
    %v430 = vld [vmem:[%s0 + $0x39] sm:$0xff]
    %v431 = vld [vmem:[%s0 + $0x41] sm:$0xff]
    %v432 = vld [vmem:[%s0 + $0x49] sm:$0xff]
    %v433 = vld [vmem:[%s0 + $0x51] sm:$0xff]
    %v434 = vld [vmem:[%s0 + $0x59] sm:$0xff]
    %v435 = vld [vmem:[%s0 + $0x61] sm:$0xff]
    %v436 = vld [vmem:[%s0 + $0x69] sm:$0xff]
    %v437 = vld [vmem:[%s0 + $0x71] sm:$0xff]
    %v438 = vld [vmem:[%s0 + $0x79] sm:$0xff]
    %v439 = vld [vmem:[%s0 + $0x81] sm:$0xff]
    %v440 = vld [vmem:[%s0 + $0x89] sm:$0xff]
    %v441 = vld [vmem:[%s0 + $0x91] sm:$0xff]
    %v442 = vld [vmem:[%s0 + $0x99] sm:$0xff]
    %v443 = vld [vmem:[%s0 + $0xa1] sm:$0xff]
    %v444 = vld [vmem:[%s0 + $0xa9] sm:$0xff]
    %v445 = vld [vmem:[%s0 + $0x2] sm:$0xff]
    %v446 = vld [vmem:[%s0 + $0xa] sm:$0xff]
    %v447 = vld [vmem:[%s0 + $0x12] sm:$0xff]
    %v448 = vld [vmem:[%s0 + $0x1a] sm:$0xff]
    %v449 = vld [vmem:[%s0 + $0x22] sm:$0xff]
    %v450 = vld [vmem:[%s0 + $0x2a] sm:$0xff]
    %v451 = vld [vmem:[%s0 + $0x32] sm:$0xff]
    %v452 = vld [vmem:[%s0 + $0x3a] sm:$0xff]
    %v453 = vld [vmem:[%s0 + $0x42] sm:$0xff]
    %v454 = vld [vmem:[%s0 + $0x4a] sm:$0xff]
    %v455 = vld [vmem:[%s0 + $0x52] sm:$0xff]
    %v456 = vld [vmem:[%s0 + $0x5a] sm:$0xff]
    %v457 = vld [vmem:[%s0 + $0x62] sm:$0xff]
    %v458 = vld [vmem:[%s0 + $0x6a] sm:$0xff]
    %v459 = vld [vmem:[%s0 + $0x72] sm:$0xff]
    %v460 = vld [vmem:[%s0 + $0x7a] sm:$0xff]
    %v461 = vld [vmem:[%s0 + $0x82] sm:$0xff]
    %v462 = vld [vmem:[%s0 + $0x8a] sm:$0xff]
    %v463 = vld [vmem:[%s0 + $0x92] sm:$0xff]
    %v464 = vld [vmem:[%s0 + $0x9a] sm:$0xff]
    %v465 = vld [vmem:[%s0 + $0xa2] sm:$0xff]
    %v466 = vld [vmem:[%s0 + $0xaa] sm:$0xff]
    %v467 = vsel %vm149, 1, 0
    %v468 = vsel %vm150, 1, 0
    %v469 = vsel %vm151, 1, 0
    %v470 = vsel %vm152, 1, 0
    %v471 = vsel %vm153, 1, 0
    %v472 = vsel %vm154, 1, 0
    %v473 = vsel %vm155, 1, 0
    %v474 = vsel %vm156, 1, 0
    %v475 = vsel %vm157, 1, 0
    %v476 = vsel %vm158, 1, 0
    %v477 = vsel %vm159, 1, 0
    %v478 = vsel %vm160, 1, 0
    %v479 = vsel %vm161, 1, 0
    %v480 = vsel %vm162, 1, 0
    %v481 = vsel %vm163, 1, 0
    %v482 = vsel %vm164, 1, 0
    %v483 = vsel %vm165, 1, 0
    %v484 = vsel %vm166, 1, 0
    %v485 = vsel %vm167, 1, 0
    %v486 = vsel %vm168, 1, 0
    %v487 = vsel %vm169, 1, 0
    %v488 = vsel %vm170, 1, 0
    %vm489 = vcmp.eq.s32.totalorder %v467, 1
    %vm490 = vcmp.eq.s32.totalorder %v468, 1
    %vm491 = vcmp.eq.s32.totalorder %v469, 1
    %vm492 = vcmp.eq.s32.totalorder %v470, 1
    %vm493 = vcmp.eq.s32.totalorder %v471, 1
    %vm494 = vcmp.eq.s32.totalorder %v472, 1
    %vm495 = vcmp.eq.s32.totalorder %v473, 1
    %vm496 = vcmp.eq.s32.totalorder %v474, 1
    %vm497 = vcmp.eq.s32.totalorder %v475, 1
    %vm498 = vcmp.eq.s32.totalorder %v476, 1
    %vm499 = vcmp.eq.s32.totalorder %v477, 1
    %vm500 = vcmp.eq.s32.totalorder %v478, 1
    %vm501 = vcmp.eq.s32.totalorder %v479, 1
    %vm502 = vcmp.eq.s32.totalorder %v480, 1
    %vm503 = vcmp.eq.s32.totalorder %v481, 1
    %vm504 = vcmp.eq.s32.totalorder %v482, 1
    %vm505 = vcmp.eq.s32.totalorder %v483, 1
    %vm506 = vcmp.eq.s32.totalorder %v484, 1
    %vm507 = vcmp.eq.s32.totalorder %v485, 1
    %vm508 = vcmp.eq.s32.totalorder %v486, 1
    %vm509 = vcmp.eq.s32.totalorder %v487, 1
    %vm510 = vcmp.eq.s32.totalorder %v488, 1
    %v511 = vsel %vm489, 0.0, %v445
    %v512 = vsel %vm490, 0.0, %v446
    %v513 = vsel %vm491, 0.0, %v447
    %v514 = vsel %vm492, 0.0, %v448
    %v515 = vsel %vm493, 0.0, %v449
    %v516 = vsel %vm494, 0.0, %v450
    %v517 = vsel %vm495, 0.0, %v451
    %v518 = vsel %vm496, 0.0, %v452
    %v519 = vsel %vm497, 0.0, %v453
    %v520 = vsel %vm498, 0.0, %v454
    %v521 = vsel %vm499, 0.0, %v455
    %v522 = vsel %vm500, 0.0, %v456
    %v523 = vsel %vm501, 0.0, %v457
    %v524 = vsel %vm502, 0.0, %v458
    %v525 = vsel %vm503, 0.0, %v459
    %v526 = vsel %vm504, 0.0, %v460
    %v527 = vsel %vm505, 0.0, %v461
    %v528 = vsel %vm506, 0.0, %v462
    %v529 = vsel %vm507, 0.0, %v463
    %v530 = vsel %vm508, 0.0, %v464
    %v531 = vsel %vm509, 0.0, %v465
    %v532 = vsel %vm510, 0.0, %v466
    %555 = vrot.lane.b32.xlu0 %v423, 3
    %v556 = vpop.permute.xlu0 %555
    %557 = vrot.lane.b32.xlu0 %v424, 3
    %v558 = vpop.permute.xlu0 %557
    %559 = vrot.lane.b32.xlu0 %v425, 3
    %v560 = vpop.permute.xlu0 %559
    %561 = vrot.lane.b32.xlu0 %v426, 3
    %v562 = vpop.permute.xlu0 %561
    %563 = vrot.lane.b32.xlu0 %v427, 3
    %v564 = vpop.permute.xlu0 %563
    %565 = vrot.lane.b32.xlu0 %v428, 3
    %v566 = vpop.permute.xlu0 %565
    %567 = vrot.lane.b32.xlu0 %v429, 3
    %v568 = vpop.permute.xlu0 %567
    %569 = vrot.lane.b32.xlu0 %v430, 3
    %v570 = vpop.permute.xlu0 %569
    %571 = vrot.lane.b32.xlu0 %v431, 3
    %v572 = vpop.permute.xlu0 %571
    %573 = vrot.lane.b32.xlu0 %v432, 3
    %v574 = vpop.permute.xlu0 %573
    %575 = vrot.lane.b32.xlu0 %v433, 3
    %v576 = vpop.permute.xlu0 %575
    %577 = vrot.lane.b32.xlu0 %v434, 3
    %v578 = vpop.permute.xlu0 %577
    %579 = vrot.lane.b32.xlu0 %v435, 3
    %v580 = vpop.permute.xlu0 %579
    %581 = vrot.lane.b32.xlu0 %v436, 3
    %v582 = vpop.permute.xlu0 %581
    %583 = vrot.lane.b32.xlu0 %v437, 3
    %v584 = vpop.permute.xlu0 %583
    %585 = vrot.lane.b32.xlu0 %v438, 3
    %v586 = vpop.permute.xlu0 %585
    %587 = vrot.lane.b32.xlu0 %v439, 3
    %v588 = vpop.permute.xlu0 %587
    %589 = vrot.lane.b32.xlu0 %v440, 3
    %v590 = vpop.permute.xlu0 %589
    %591 = vrot.lane.b32.xlu0 %v441, 3
    %v592 = vpop.permute.xlu0 %591
    %593 = vrot.lane.b32.xlu0 %v442, 3
    %v594 = vpop.permute.xlu0 %593
    %595 = vrot.lane.b32.xlu0 %v443, 3
    %v596 = vpop.permute.xlu0 %595
    %597 = vrot.lane.b32.xlu0 %v444, 3
    %v598 = vpop.permute.xlu0 %597
    %643 = vrot.lane.b32.xlu0 %v511, 6
    %v644 = vpop.permute.xlu0 %643
    %645 = vrot.lane.b32.xlu0 %v512, 6
    %v646 = vpop.permute.xlu0 %645
    %647 = vrot.lane.b32.xlu0 %v513, 6
    %v648 = vpop.permute.xlu0 %647
    %649 = vrot.lane.b32.xlu0 %v514, 6
    %v650 = vpop.permute.xlu0 %649
    %651 = vrot.lane.b32.xlu0 %v515, 6
    %v652 = vpop.permute.xlu0 %651
    %653 = vrot.lane.b32.xlu0 %v516, 6
    %v654 = vpop.permute.xlu0 %653
    %655 = vrot.lane.b32.xlu0 %v517, 6
    %v656 = vpop.permute.xlu0 %655
    %657 = vrot.lane.b32.xlu0 %v518, 6
    %v658 = vpop.permute.xlu0 %657
    %659 = vrot.lane.b32.xlu0 %v519, 6
    %v660 = vpop.permute.xlu0 %659
    %661 = vrot.lane.b32.xlu0 %v520, 6
    %v662 = vpop.permute.xlu0 %661
    %663 = vrot.lane.b32.xlu0 %v521, 6
    %v664 = vpop.permute.xlu0 %663
    %665 = vrot.lane.b32.xlu0 %v522, 6
    %v666 = vpop.permute.xlu0 %665
    %667 = vrot.lane.b32.xlu0 %v523, 6
    %v668 = vpop.permute.xlu0 %667
    %669 = vrot.lane.b32.xlu0 %v524, 6
    %v670 = vpop.permute.xlu0 %669
    %671 = vrot.lane.b32.xlu0 %v525, 6
    %v672 = vpop.permute.xlu0 %671
    %673 = vrot.lane.b32.xlu0 %v526, 6
    %v674 = vpop.permute.xlu0 %673
    %675 = vrot.lane.b32.xlu0 %v527, 6
    %v676 = vpop.permute.xlu0 %675
    %677 = vrot.lane.b32.xlu0 %v528, 6
    %v678 = vpop.permute.xlu0 %677
    %679 = vrot.lane.b32.xlu0 %v529, 6
    %v680 = vpop.permute.xlu0 %679
    %681 = vrot.lane.b32.xlu0 %v530, 6
    %v682 = vpop.permute.xlu0 %681
    %683 = vrot.lane.b32.xlu0 %v531, 6
    %v684 = vpop.permute.xlu0 %683
    %685 = vrot.lane.b32.xlu0 %v532, 6
    %v686 = vpop.permute.xlu0 %685
    %vm709 = vcmask 23552
    %v710 = vsel %vm709, %v401, %v556
    %v711 = vsel %vm709, %v402, %v558
    %v712 = vsel %vm709, %v403, %v560
    %v713 = vsel %vm709, %v404, %v562
    %v714 = vsel %vm709, %v405, %v564
    %v715 = vsel %vm709, %v406, %v566
    %v716 = vsel %vm709, %v407, %v568
    %v717 = vsel %vm709, %v408, %v570
    %v718 = vsel %vm709, %v409, %v572
    %v719 = vsel %vm709, %v410, %v574
    %v720 = vsel %vm709, %v411, %v576
    %v721 = vsel %vm709, %v412, %v578
    %v722 = vsel %vm709, %v413, %v580
    %v723 = vsel %vm709, %v414, %v582
    %v724 = vsel %vm709, %v415, %v584
    %v725 = vsel %vm709, %v416, %v586
    %v726 = vsel %vm709, %v417, %v588
    %v727 = vsel %vm709, %v418, %v590
    %v728 = vsel %vm709, %v419, %v592
    %v729 = vsel %vm709, %v420, %v594
    %v730 = vsel %vm709, %v421, %v596
    %v731 = vsel %vm709, %v422, %v598
    %vm732 = vcmask 48128
    %v733 = vsel %vm732, %v710, %v644
    %v734 = vsel %vm732, %v711, %v646
    %v735 = vsel %vm732, %v712, %v648
    %v736 = vsel %vm732, %v713, %v650
    %v737 = vsel %vm732, %v714, %v652
    %v738 = vsel %vm732, %v715, %v654
    %v739 = vsel %vm732, %v716, %v656
    %v740 = vsel %vm732, %v717, %v658
    %v741 = vsel %vm732, %v718, %v660
    %v742 = vsel %vm732, %v719, %v662
    %v743 = vsel %vm732, %v720, %v664
    %v744 = vsel %vm732, %v721, %v666
    %v745 = vsel %vm732, %v722, %v668
    %v746 = vsel %vm732, %v723, %v670
    %v747 = vsel %vm732, %v724, %v672
    %v748 = vsel %vm732, %v725, %v674
    %v749 = vsel %vm732, %v726, %v676
    %v750 = vsel %vm732, %v727, %v678
    %v751 = vsel %vm732, %v728, %v680
    %v752 = vsel %vm732, %v729, %v682
    %v753 = vsel %vm732, %v730, %v684
    %v754 = vsel %vm732, %v731, %v686
    %v755 = vpack.c.bf16 %v734, %v733
    %v756 = vpack.c.bf16 %v736, %v735
    %v757 = vpack.c.bf16 %v738, %v737
    %v758 = vpack.c.bf16 %v740, %v739
    %v759 = vpack.c.bf16 %v742, %v741
    %v760 = vpack.c.bf16 %v744, %v743
    %v761 = vpack.c.bf16 %v746, %v745
    %v762 = vpack.c.bf16 %v748, %v747
    %v763 = vpack.c.bf16 %v750, %v749
    %v764 = vpack.c.bf16 %v752, %v751
    %v765 = vpack.c.bf16 %v754, %v753
    %v766 = vlaneseq
    %v767 = vshrl.u32 %v766, 7
    %v768 = vsub.s32 0, %v767
    %v769 = vrot.slane %v227, %v768
    %vm770 = vcmask 72704
    %v772 = vsel %vm770, %v755, 0
    %v775 = vsel %vm770, %v756, 0
    %v778 = vsel %vm770, %v757, 0
    %v781 = vsel %vm770, %v758, 0
    %v784 = vsel %vm770, %v759, 0
    %v787 = vsel %vm770, %v760, 0
    %v790 = vsel %vm770, %v761, 0
    %v793 = vsel %vm770, %v762, 0
    %v796 = vsel %vm770, %v763, 0
    %v799 = vsel %vm770, %v764, 0
    %v802 = vsel %vm770, %v765, 0
    %vm804 = vcmask 1043456
    %vm805 = vcmask 1044480
    %v806 = vsel %vm804, 4294967295, 65535
    %v807 = vsel %vm805, %v806, 0
    %v809 = vand.u32 %v217, %v807
    %811 = vmatprep.subr.bf16.mxu0 0
    %812 = vmatpush1.bf16.msra.mxu0 %v809
    %813 = vmatprep.subr.bf16.mxu0 0
    %814 = vmatpush1.bf16.msra.mxu0 0
    %815 = vmatprep.subr.bf16.mxu0 0
    %816 = vmatpush1.bf16.msra.mxu0 0
    %817 = vmatprep.subr.bf16.mxu0 0
    %818 = vmatpush1.bf16.msra.mxu0 0
    %819 = vmatprep.subr.bf16.mxu0 0
    %820 = vmatpush1.bf16.msra.mxu0 0
    %821 = vmatprep.subr.bf16.mxu0 0
    %822 = vmatpush1.bf16.msra.mxu0 0
    %823 = vmatprep.subr.bf16.mxu0 0
    %824 = vmatpush1.bf16.msra.mxu0 0
    %825 = vmatprep.subr.bf16.mxu0 0
    %826 = vmatpush1.bf16.msra.mxu0 0
    %827 = vmatprep.subr.bf16.mxu0 0
    %828 = vmatpush1.bf16.msra.mxu0 0
    %829 = vmatprep.subr.bf16.mxu0 0
    %830 = vmatpush1.bf16.msra.mxu0 0
    %831 = vmatprep.subr.bf16.mxu0 0
    %832 = vmatpush1.bf16.msra.mxu0 0
    %833 = vmatprep.subr.bf16.mxu0 0
    %834 = vmatpush1.bf16.msra.mxu0 0
    %835 = vmatprep.subr.bf16.mxu0 0
    %836 = vmatpush1.bf16.msra.mxu0 0
    %837 = vmatprep.subr.bf16.mxu0 0
    %838 = vmatpush1.bf16.msra.mxu0 0
    %839 = vmatprep.subr.bf16.mxu0 0
    %840 = vmatpush1.bf16.msra.mxu0 0
    %841 = vmatprep.subr.bf16.mxu0 0
    %842 = vmatpush1.bf16.msra.mxu0 0
    %843 = vmatprep.mubr.bf16.mxu0 0
    %844 = vmatmul.mubr.bf16.gmra.mrb[0].mxu0 %v772
    %v845 = vpop.f32.mrb[0].mxu0
    %v846 = vadd.f32 %v769, %v845
    %v847 = vpop.f32.mrb[0].mxu0
    %v848 = vpop.f32.mrb[0].mxu0
    %v849 = vadd.f32 %v769, %v848
    %v850 = vpop.f32.mrb[0].mxu0
    %851 = vmatprep.mubr.bf16.mxu0 0
    %852 = vmatmul.mubr.bf16.gmra.mrb[0].mxu0 %v775
    %v853 = vpop.f32.mrb[0].mxu0
    %v854 = vadd.f32 %v769, %v853
    %v855 = vpop.f32.mrb[0].mxu0
    %v856 = vpop.f32.mrb[0].mxu0
    %v857 = vadd.f32 %v769, %v856
    %v858 = vpop.f32.mrb[0].mxu0
    %859 = vmatprep.mubr.bf16.mxu0 0
    %860 = vmatmul.mubr.bf16.gmra.mrb[0].mxu0 %v778
    %v861 = vpop.f32.mrb[0].mxu0
    %v862 = vadd.f32 %v769, %v861
    %v863 = vpop.f32.mrb[0].mxu0
    %v864 = vpop.f32.mrb[0].mxu0
    %v865 = vadd.f32 %v769, %v864
    %v866 = vpop.f32.mrb[0].mxu0
    %867 = vmatprep.mubr.bf16.mxu0 0
    %868 = vmatmul.mubr.bf16.gmra.mrb[0].mxu0 %v781
    %v869 = vpop.f32.mrb[0].mxu0
    %v870 = vadd.f32 %v769, %v869
    %v871 = vpop.f32.mrb[0].mxu0
    %v872 = vpop.f32.mrb[0].mxu0
    %v873 = vadd.f32 %v769, %v872
    %v874 = vpop.f32.mrb[0].mxu0
    %875 = vmatprep.mubr.bf16.mxu0 0
    %876 = vmatmul.mubr.bf16.gmra.mrb[0].mxu0 %v784
    %v877 = vpop.f32.mrb[0].mxu0
    %v878 = vadd.f32 %v769, %v877
    %v879 = vpop.f32.mrb[0].mxu0
    %v880 = vpop.f32.mrb[0].mxu0
    %v881 = vadd.f32 %v769, %v880
    %v882 = vpop.f32.mrb[0].mxu0
    %883 = vmatprep.mubr.bf16.mxu0 0
    %884 = vmatmul.mubr.bf16.gmra.mrb[0].mxu0 %v787
    %v885 = vpop.f32.mrb[0].mxu0
    %v886 = vadd.f32 %v769, %v885
    %v887 = vpop.f32.mrb[0].mxu0
    %v888 = vpop.f32.mrb[0].mxu0
    %v889 = vadd.f32 %v769, %v888
    %v890 = vpop.f32.mrb[0].mxu0
    %891 = vmatprep.mubr.bf16.mxu0 0
    %892 = vmatmul.mubr.bf16.gmra.mrb[0].mxu0 %v790
    %v893 = vpop.f32.mrb[0].mxu0
    %v894 = vadd.f32 %v769, %v893
    %v895 = vpop.f32.mrb[0].mxu0
    %v896 = vpop.f32.mrb[0].mxu0
    %v897 = vadd.f32 %v769, %v896
    %v898 = vpop.f32.mrb[0].mxu0
    %899 = vmatprep.mubr.bf16.mxu0 0
    %900 = vmatmul.mubr.bf16.gmra.mrb[0].mxu0 %v793
    %v901 = vpop.f32.mrb[0].mxu0
    %v902 = vadd.f32 %v769, %v901
    %v903 = vpop.f32.mrb[0].mxu0
    %v904 = vpop.f32.mrb[0].mxu0
    %v905 = vadd.f32 %v769, %v904
    %v906 = vpop.f32.mrb[0].mxu0
    %907 = vmatprep.mubr.bf16.mxu0 0
    %908 = vmatmul.mubr.bf16.gmra.mrb[0].mxu0 %v796
    %v909 = vpop.f32.mrb[0].mxu0
    %v910 = vadd.f32 %v769, %v909
    %v911 = vpop.f32.mrb[0].mxu0
    %v912 = vpop.f32.mrb[0].mxu0
    %v913 = vadd.f32 %v769, %v912
    %v914 = vpop.f32.mrb[0].mxu0
    %915 = vmatprep.mubr.bf16.mxu0 0
    %916 = vmatmul.mubr.bf16.gmra.mrb[0].mxu0 %v799
    %v917 = vpop.f32.mrb[0].mxu0
    %v918 = vadd.f32 %v769, %v917
    %v919 = vpop.f32.mrb[0].mxu0
    %v920 = vpop.f32.mrb[0].mxu0
    %v921 = vadd.f32 %v769, %v920
    %v922 = vpop.f32.mrb[0].mxu0
    %923 = vmatprep.mubr.bf16.mxu0 0
    %924 = vmatmul.mubr.bf16.gmra.mrb[0].mxu0 %v802
    %v925 = vpop.f32.mrb[0].mxu0
    %v926 = vadd.f32 %v769, %v925
    %v927 = vpop.f32.mrb[0].mxu0
    %v928 = vpop.f32.mrb[0].mxu0
    %v929 = vadd.f32 %v769, %v928
    %v930 = vpop.f32.mrb[0].mxu0
    %931 = vdwg.mxu0
    %v932 = vmax.f32 %v846, 0.0
    %v933 = vmax.f32 %v849, 0.0
    %v934 = vmax.f32 %v854, 0.0
    %v935 = vmax.f32 %v857, 0.0
    %v936 = vmax.f32 %v862, 0.0
    %v937 = vmax.f32 %v865, 0.0
    %v938 = vmax.f32 %v870, 0.0
    %v939 = vmax.f32 %v873, 0.0
    %v940 = vmax.f32 %v878, 0.0
    %v941 = vmax.f32 %v881, 0.0
    %v942 = vmax.f32 %v886, 0.0
    %v943 = vmax.f32 %v889, 0.0
    %v944 = vmax.f32 %v894, 0.0
    %v945 = vmax.f32 %v897, 0.0
    %v946 = vmax.f32 %v902, 0.0
    %v947 = vmax.f32 %v905, 0.0
    %v948 = vmax.f32 %v910, 0.0
    %v949 = vmax.f32 %v913, 0.0
    %v950 = vmax.f32 %v918, 0.0
    %v951 = vmax.f32 %v921, 0.0
    %v952 = vmax.f32 %v926, 0.0
    %v953 = vmax.f32 %v929, 0.0
    %vm954 = vcmask 130048
    %955 = vst.msk [vmem:[#allocation2] sm:$0xff] %vm954, %v932
    %956 = vst.msk [vmem:[#allocation2 + $0x8] sm:$0xff] %vm954, %v933
    %957 = vst.msk [vmem:[#allocation2 + $0x10] sm:$0xff] %vm954, %v934
    %958 = vst.msk [vmem:[#allocation2 + $0x18] sm:$0xff] %vm954, %v935
    %959 = vst.msk [vmem:[#allocation2 + $0x20] sm:$0xff] %vm954, %v936
    %960 = vst.msk [vmem:[#allocation2 + $0x28] sm:$0xff] %vm954, %v937
    %961 = vst.msk [vmem:[#allocation2 + $0x30] sm:$0xff] %vm954, %v938
    %962 = vst.msk [vmem:[#allocation2 + $0x38] sm:$0xff] %vm954, %v939
    %963 = vst.msk [vmem:[#allocation2 + $0x40] sm:$0xff] %vm954, %v940
    %964 = vst.msk [vmem:[#allocation2 + $0x48] sm:$0xff] %vm954, %v941
    %965 = vst.msk [vmem:[#allocation2 + $0x50] sm:$0xff] %vm954, %v942
    %966 = vst.msk [vmem:[#allocation2 + $0x58] sm:$0xff] %vm954, %v943
    %967 = vst.msk [vmem:[#allocation2 + $0x60] sm:$0xff] %vm954, %v944
    %968 = vst.msk [vmem:[#allocation2 + $0x68] sm:$0xff] %vm954, %v945
    %969 = vst.msk [vmem:[#allocation2 + $0x70] sm:$0xff] %vm954, %v946
    %970 = vst.msk [vmem:[#allocation2 + $0x78] sm:$0xff] %vm954, %v947
    %971 = vst.msk [vmem:[#allocation2 + $0x80] sm:$0xff] %vm954, %v948
    %972 = vst.msk [vmem:[#allocation2 + $0x88] sm:$0xff] %vm954, %v949
    %973 = vst.msk [vmem:[#allocation2 + $0x90] sm:$0xff] %vm954, %v950
    %974 = vst.msk [vmem:[#allocation2 + $0x98] sm:$0xff] %vm954, %v951
    %975 = vst.msk [vmem:[#allocation2 + $0xa0] sm:$0xff] %vm954, %v952
    %976 = vst.msk [vmem:[#allocation2 + $0xa8] sm:$0xff] %vm954, %v953
    %v977 = vld [vmem:[#allocation2] ss:$2 sm:$0xff]
    %s978 = scalar_lea.vmem [#allocation2], 16
    %v979 = vld [vmem:[%s978] ss:$2 sm:$0xff]
    %s980 = scalar_lea.vmem [#allocation2], 32
    %v981 = vld [vmem:[%s980] ss:$2 sm:$0xff]
    %s982 = scalar_lea.vmem [#allocation2], 48
    %v983 = vld [vmem:[%s982] ss:$2 sm:$0xff]
    %s984 = scalar_lea.vmem [#allocation2], 64
    %v985 = vld [vmem:[%s984] ss:$2 sm:$0xff]
    %s986 = scalar_lea.vmem [#allocation2], 80
    %v987 = vld [vmem:[%s986] ss:$2 sm:$0xff]
    %s988 = scalar_lea.vmem [#allocation2], 96
    %v989 = vld [vmem:[%s988] ss:$2 sm:$0xff]
    %s990 = scalar_lea.vmem [#allocation2], 112
    %v991 = vld [vmem:[%s990] ss:$2 sm:$0xff]
    %s992 = scalar_lea.vmem [#allocation2], 128
    %v993 = vld [vmem:[%s992] ss:$2 sm:$0xff]
    %s994 = scalar_lea.vmem [#allocation2], 144
    %v995 = vld [vmem:[%s994] ss:$2 sm:$0xff]
    %s996 = scalar_lea.vmem [#allocation2], 160
    %v997 = vld [vmem:[%s996] ss:$2 sm:$0xff]
    %s998 = scalar_lea.vmem [#allocation2], 1
    %v999 = vld [vmem:[%s998] ss:$2 sm:$0xff]
    %s1000 = scalar_lea.vmem [#allocation2], 17
    %v1001 = vld [vmem:[%s1000] ss:$2 sm:$0xff]
    %s1002 = scalar_lea.vmem [#allocation2], 33
    %v1003 = vld [vmem:[%s1002] ss:$2 sm:$0xff]
    %s1004 = scalar_lea.vmem [#allocation2], 49
    %v1005 = vld [vmem:[%s1004] ss:$2 sm:$0xff]
    %s1006 = scalar_lea.vmem [#allocation2], 65
    %v1007 = vld [vmem:[%s1006] ss:$2 sm:$0xff]
    %s1008 = scalar_lea.vmem [#allocation2], 81
    %v1009 = vld [vmem:[%s1008] ss:$2 sm:$0xff]
    %s1010 = scalar_lea.vmem [#allocation2], 97
    %v1011 = vld [vmem:[%s1010] ss:$2 sm:$0xff]
    %s1012 = scalar_lea.vmem [#allocation2], 113
    %v1013 = vld [vmem:[%s1012] ss:$2 sm:$0xff]
    %s1014 = scalar_lea.vmem [#allocation2], 129
    %v1015 = vld [vmem:[%s1014] ss:$2 sm:$0xff]
    %s1016 = scalar_lea.vmem [#allocation2], 145
    %v1017 = vld [vmem:[%s1016] ss:$2 sm:$0xff]
    %s1018 = scalar_lea.vmem [#allocation2], 161
    %v1019 = vld [vmem:[%s1018] ss:$2 sm:$0xff]
    %v1020 = vmax.f32 %v977, %v999
    %v1021 = vmax.f32 %v979, %v1001
    %v1022 = vmax.f32 %v981, %v1003
    %v1023 = vmax.f32 %v983, %v1005
    %v1024 = vmax.f32 %v985, %v1007
    %v1025 = vmax.f32 %v987, %v1009
    %v1026 = vmax.f32 %v989, %v1011
    %v1027 = vmax.f32 %v991, %v1013
    %v1028 = vmax.f32 %v993, %v1015
    %v1029 = vmax.f32 %v995, %v1017
    %v1030 = vmax.f32 %v997, %v1019
    %1031 = vst.msk [vmem:[#allocation3 + $0x1] sm:$0xff] %vm954, %v1020
    %1032 = vst.msk [vmem:[#allocation3 + $0x9] sm:$0xff] %vm954, %v1021
    %1033 = vst.msk [vmem:[#allocation3 + $0x11] sm:$0xff] %vm954, %v1022
    %1034 = vst.msk [vmem:[#allocation3 + $0x19] sm:$0xff] %vm954, %v1023
    %1035 = vst.msk [vmem:[#allocation3 + $0x21] sm:$0xff] %vm954, %v1024
    %1036 = vst.msk [vmem:[#allocation3 + $0x29] sm:$0xff] %vm954, %v1025
    %1037 = vst.msk [vmem:[#allocation3 + $0x31] sm:$0xff] %vm954, %v1026
    %1038 = vst.msk [vmem:[#allocation3 + $0x39] sm:$0xff] %vm954, %v1027
    %1039 = vst.msk [vmem:[#allocation3 + $0x41] sm:$0xff] %vm954, %v1028
    %1040 = vst.msk [vmem:[#allocation3 + $0x49] sm:$0xff] %vm954, %v1029
    %1041 = vst.msk [vmem:[#allocation3 + $0x51] sm:$0xff] %vm954, %v1030
    %v1042 = vld [vmem:[#allocation3] sm:$0xff]
    %v1043 = vld [vmem:[#allocation3 + $0x8] sm:$0xff]
    %v1044 = vld [vmem:[#allocation3 + $0x10] sm:$0xff]
    %v1045 = vld [vmem:[#allocation3 + $0x18] sm:$0xff]
    %v1046 = vld [vmem:[#allocation3 + $0x20] sm:$0xff]
    %v1047 = vld [vmem:[#allocation3 + $0x28] sm:$0xff]
    %v1048 = vld [vmem:[#allocation3 + $0x30] sm:$0xff]
    %v1049 = vld [vmem:[#allocation3 + $0x38] sm:$0xff]
    %v1050 = vld [vmem:[#allocation3 + $0x40] sm:$0xff]
    %v1051 = vld [vmem:[#allocation3 + $0x48] sm:$0xff]
    %v1052 = vld [vmem:[#allocation3 + $0x50] sm:$0xff]
    %v1053 = vsel %vm193, 1, 0
    %v1054 = vsel %vm194, 1, 0
    %v1055 = vsel %vm195, 1, 0
    %v1056 = vsel %vm196, 1, 0
    %v1057 = vsel %vm197, 1, 0
    %v1058 = vsel %vm198, 1, 0
    %v1059 = vsel %vm199, 1, 0
    %v1060 = vsel %vm200, 1, 0
    %v1061 = vsel %vm201, 1, 0
    %v1062 = vsel %vm202, 1, 0
    %v1063 = vsel %vm203, 1, 0
    %vm1064 = vcmp.eq.s32.totalorder %v1053, 1
    %vm1065 = vcmp.eq.s32.totalorder %v1054, 1
    %vm1066 = vcmp.eq.s32.totalorder %v1055, 1
    %vm1067 = vcmp.eq.s32.totalorder %v1056, 1
    %vm1068 = vcmp.eq.s32.totalorder %v1057, 1
    %vm1069 = vcmp.eq.s32.totalorder %v1058, 1
    %vm1070 = vcmp.eq.s32.totalorder %v1059, 1
    %vm1071 = vcmp.eq.s32.totalorder %v1060, 1
    %vm1072 = vcmp.eq.s32.totalorder %v1061, 1
    %vm1073 = vcmp.eq.s32.totalorder %v1062, 1
    %vm1074 = vcmp.eq.s32.totalorder %v1063, 1
    %v1075 = vsel %vm1064, 0.0, %v1042
    %v1076 = vsel %vm1065, 0.0, %v1043
    %v1077 = vsel %vm1066, 0.0, %v1044
    %v1078 = vsel %vm1067, 0.0, %v1045
    %v1079 = vsel %vm1068, 0.0, %v1046
    %v1080 = vsel %vm1069, 0.0, %v1047
    %v1081 = vsel %vm1070, 0.0, %v1048
    %v1082 = vsel %vm1071, 0.0, %v1049
    %v1083 = vsel %vm1072, 0.0, %v1050
    %v1084 = vsel %vm1073, 0.0, %v1051
    %v1085 = vsel %vm1074, 0.0, %v1052
    %v1086 = vld [vmem:[#allocation3 + $0x2] sm:$0xff]
    %v1087 = vld [vmem:[#allocation3 + $0xa] sm:$0xff]
    %v1088 = vld [vmem:[#allocation3 + $0x12] sm:$0xff]
    %v1089 = vld [vmem:[#allocation3 + $0x1a] sm:$0xff]
    %v1090 = vld [vmem:[#allocation3 + $0x22] sm:$0xff]
    %v1091 = vld [vmem:[#allocation3 + $0x2a] sm:$0xff]
    %v1092 = vld [vmem:[#allocation3 + $0x32] sm:$0xff]
    %v1093 = vld [vmem:[#allocation3 + $0x3a] sm:$0xff]
    %v1094 = vld [vmem:[#allocation3 + $0x42] sm:$0xff]
    %v1095 = vld [vmem:[#allocation3 + $0x4a] sm:$0xff]
    %v1096 = vld [vmem:[#allocation3 + $0x52] sm:$0xff]
    %v1097 = vsel %vm204, 1, 0
    %v1098 = vsel %vm205, 1, 0
    %v1099 = vsel %vm206, 1, 0
    %v1100 = vsel %vm207, 1, 0
    %v1101 = vsel %vm208, 1, 0
    %v1102 = vsel %vm209, 1, 0
    %v1103 = vsel %vm210, 1, 0
    %v1104 = vsel %vm211, 1, 0
    %v1105 = vsel %vm212, 1, 0
    %v1106 = vsel %vm213, 1, 0
    %v1107 = vsel %vm214, 1, 0
    %vm1108 = vcmp.eq.s32.totalorder %v1097, 1
    %vm1109 = vcmp.eq.s32.totalorder %v1098, 1
    %vm1110 = vcmp.eq.s32.totalorder %v1099, 1
    %vm1111 = vcmp.eq.s32.totalorder %v1100, 1
    %vm1112 = vcmp.eq.s32.totalorder %v1101, 1
    %vm1113 = vcmp.eq.s32.totalorder %v1102, 1
    %vm1114 = vcmp.eq.s32.totalorder %v1103, 1
    %vm1115 = vcmp.eq.s32.totalorder %v1104, 1
    %vm1116 = vcmp.eq.s32.totalorder %v1105, 1
    %vm1117 = vcmp.eq.s32.totalorder %v1106, 1
    %vm1118 = vcmp.eq.s32.totalorder %v1107, 1
    %v1119 = vsel %vm1108, 0.0, %v1086
    %v1120 = vsel %vm1109, 0.0, %v1087
    %v1121 = vsel %vm1110, 0.0, %v1088
    %v1122 = vsel %vm1111, 0.0, %v1089
    %v1123 = vsel %vm1112, 0.0, %v1090
    %v1124 = vsel %vm1113, 0.0, %v1091
    %v1125 = vsel %vm1114, 0.0, %v1092
    %v1126 = vsel %vm1115, 0.0, %v1093
    %v1127 = vsel %vm1116, 0.0, %v1094
    %v1128 = vsel %vm1117, 0.0, %v1095
    %v1129 = vsel %vm1118, 0.0, %v1096
    %1141 = vrot.lane.b32.xlu0 %v1020, 16
    %v1142 = vpop.permute.xlu0 %1141
    %1143 = vrot.lane.b32.xlu0 %v1021, 16
    %v1144 = vpop.permute.xlu0 %1143
    %1145 = vrot.lane.b32.xlu0 %v1022, 16
    %v1146 = vpop.permute.xlu0 %1145
    %1147 = vrot.lane.b32.xlu0 %v1023, 16
    %v1148 = vpop.permute.xlu0 %1147
    %1149 = vrot.lane.b32.xlu0 %v1024, 16
    %v1150 = vpop.permute.xlu0 %1149
    %1151 = vrot.lane.b32.xlu0 %v1025, 16
    %v1152 = vpop.permute.xlu0 %1151
    %1153 = vrot.lane.b32.xlu0 %v1026, 16
    %v1154 = vpop.permute.xlu0 %1153
    %1155 = vrot.lane.b32.xlu0 %v1027, 16
    %v1156 = vpop.permute.xlu0 %1155
    %1157 = vrot.lane.b32.xlu0 %v1028, 16
    %v1158 = vpop.permute.xlu0 %1157
    %1159 = vrot.lane.b32.xlu0 %v1029, 16
    %v1160 = vpop.permute.xlu0 %1159
    %1161 = vrot.lane.b32.xlu0 %v1030, 16
    %v1162 = vpop.permute.xlu0 %1161
    %1185 = vrot.lane.b32.xlu0 %v1119, 32
    %v1186 = vpop.permute.xlu0 %1185
    %1187 = vrot.lane.b32.xlu0 %v1120, 32
    %v1188 = vpop.permute.xlu0 %1187
    %1189 = vrot.lane.b32.xlu0 %v1121, 32
    %v1190 = vpop.permute.xlu0 %1189
    %1191 = vrot.lane.b32.xlu0 %v1122, 32
    %v1192 = vpop.permute.xlu0 %1191
    %1193 = vrot.lane.b32.xlu0 %v1123, 32
    %v1194 = vpop.permute.xlu0 %1193
    %1195 = vrot.lane.b32.xlu0 %v1124, 32
    %v1196 = vpop.permute.xlu0 %1195
    %1197 = vrot.lane.b32.xlu0 %v1125, 32
    %v1198 = vpop.permute.xlu0 %1197
    %1199 = vrot.lane.b32.xlu0 %v1126, 32
    %v1200 = vpop.permute.xlu0 %1199
    %1201 = vrot.lane.b32.xlu0 %v1127, 32
    %v1202 = vpop.permute.xlu0 %1201
    %1203 = vrot.lane.b32.xlu0 %v1128, 32
    %v1204 = vpop.permute.xlu0 %1203
    %1205 = vrot.lane.b32.xlu0 %v1129, 32
    %v1206 = vpop.permute.xlu0 %1205
    %v1218 = vsel %vm954, %v1075, %v1142
    %v1219 = vsel %vm954, %v1076, %v1144
    %v1220 = vsel %vm954, %v1077, %v1146
    %v1221 = vsel %vm954, %v1078, %v1148
    %v1222 = vsel %vm954, %v1079, %v1150
    %v1223 = vsel %vm954, %v1080, %v1152
    %v1224 = vsel %vm954, %v1081, %v1154
    %v1225 = vsel %vm954, %v1082, %v1156
    %v1226 = vsel %vm954, %v1083, %v1158
    %v1227 = vsel %vm954, %v1084, %v1160
    %v1228 = vsel %vm954, %v1085, %v1162
    %vm1229 = vcmask 261120
    %v1230 = vsel %vm1229, %v1218, %v1186
    %v1231 = vsel %vm1229, %v1219, %v1188
    %v1232 = vsel %vm1229, %v1220, %v1190
    %v1233 = vsel %vm1229, %v1221, %v1192
    %v1234 = vsel %vm1229, %v1222, %v1194
    %v1235 = vsel %vm1229, %v1223, %v1196
    %v1236 = vsel %vm1229, %v1224, %v1198
    %v1237 = vsel %vm1229, %v1225, %v1200
    %v1238 = vsel %vm1229, %v1226, %v1202
    %v1239 = vsel %vm1229, %v1227, %v1204
    %v1240 = vsel %vm1229, %v1228, %v1206
    %v1241 = vpack.c.bf16 %v1231, %v1230
    %v1242 = vpack.c.bf16 %v1233, %v1232
    %v1243 = vpack.c.bf16 %v1235, %v1234
    %v1244 = vpack.c.bf16 %v1237, %v1236
    %v1245 = vpack.c.bf16 %v1239, %v1238
    %v1246 = vpack.c.bf16 %v1240, %v1240
    %v1247 = vlaneseq
    %v1248 = vshrl.u32 %v1247, 7
    %v1249 = vsub.s32 0, %v1248
    %v1250 = vrot.slane %v228, %v1249
    %vm1251 = vcmask 392192
    %v1253 = vsel %vm1251, %v1241, 0
    %v1256 = vsel %vm1251, %v1242, 0
    %v1259 = vsel %vm1251, %v1243, 0
    %v1262 = vsel %vm1251, %v1244, 0
    %v1265 = vsel %vm1251, %v1245, 0
    %v1268 = vsel %vm1251, %v1246, 0
    %1270 = vmatprep.subr.bf16.mxu0 0
    %1271 = vmatpush1.bf16.msra.mxu0 %v224
    %1272 = vmatprep.subr.bf16.mxu0 0
    %1273 = vmatpush1.bf16.msra.mxu0 %v225
    %1274 = vmatprep.subr.bf16.mxu0 0
    %1275 = vmatpush1.bf16.msra.mxu0 %v226
    %1276 = vmatprep.subr.bf16.mxu0 0
    %1277 = vmatpush1.bf16.msra.mxu0 0
    %1278 = vmatprep.subr.bf16.mxu0 0
    %1279 = vmatpush1.bf16.msra.mxu0 0
    %1280 = vmatprep.subr.bf16.mxu0 0
    %1281 = vmatpush1.bf16.msra.mxu0 0
    %1282 = vmatprep.subr.bf16.mxu0 0
    %1283 = vmatpush1.bf16.msra.mxu0 0
    %1284 = vmatprep.subr.bf16.mxu0 0
    %1285 = vmatpush1.bf16.msra.mxu0 0
    %1286 = vmatprep.subr.bf16.mxu0 0
    %1287 = vmatpush1.bf16.msra.mxu0 0
    %1288 = vmatprep.subr.bf16.mxu0 0
    %1289 = vmatpush1.bf16.msra.mxu0 0
    %1290 = vmatprep.subr.bf16.mxu0 0
    %1291 = vmatpush1.bf16.msra.mxu0 0
    %1292 = vmatprep.subr.bf16.mxu0 0
    %1293 = vmatpush1.bf16.msra.mxu0 0
    %1294 = vmatprep.subr.bf16.mxu0 0
    %1295 = vmatpush1.bf16.msra.mxu0 0
    %1296 = vmatprep.subr.bf16.mxu0 0
    %1297 = vmatpush1.bf16.msra.mxu0 0
    %1298 = vmatprep.subr.bf16.mxu0 0
    %1299 = vmatpush1.bf16.msra.mxu0 0
    %1300 = vmatprep.subr.bf16.mxu0 0
    %1301 = vmatpush1.bf16.msra.mxu0 0
    %1302 = vmatprep.mubr.bf16.mxu0 0
    %1303 = vmatmul.mubr.bf16.gmra.mrb[0].mxu0 %v1253
    %v1304 = vpop.f32.mrb[0].mxu0
    %v1305 = vadd.f32 %v1250, %v1304
    %v1306 = vpop.f32.mrb[0].mxu0
    %v1307 = vpop.f32.mrb[0].mxu0
    %v1308 = vadd.f32 %v1250, %v1307
    %v1309 = vpop.f32.mrb[0].mxu0
    %1310 = vmatprep.mubr.bf16.mxu0 0
    %1311 = vmatmul.mubr.bf16.gmra.mrb[0].mxu0 %v1256
    %v1312 = vpop.f32.mrb[0].mxu0
    %v1313 = vadd.f32 %v1250, %v1312
    %v1314 = vpop.f32.mrb[0].mxu0
    %v1315 = vpop.f32.mrb[0].mxu0
    %v1316 = vadd.f32 %v1250, %v1315
    %v1317 = vpop.f32.mrb[0].mxu0
    %1318 = vmatprep.mubr.bf16.mxu0 0
    %1319 = vmatmul.mubr.bf16.gmra.mrb[0].mxu0 %v1259
    %v1320 = vpop.f32.mrb[0].mxu0
    %v1321 = vadd.f32 %v1250, %v1320
    %v1322 = vpop.f32.mrb[0].mxu0
    %v1323 = vpop.f32.mrb[0].mxu0
    %v1324 = vadd.f32 %v1250, %v1323
    %v1325 = vpop.f32.mrb[0].mxu0
    %1326 = vmatprep.mubr.bf16.mxu0 0
    %1327 = vmatmul.mubr.bf16.gmra.mrb[0].mxu0 %v1262
    %v1328 = vpop.f32.mrb[0].mxu0
    %v1329 = vadd.f32 %v1250, %v1328
    %v1330 = vpop.f32.mrb[0].mxu0
    %v1331 = vpop.f32.mrb[0].mxu0
    %v1332 = vadd.f32 %v1250, %v1331
    %v1333 = vpop.f32.mrb[0].mxu0
    %1334 = vmatprep.mubr.bf16.mxu0 0
    %1335 = vmatmul.mubr.bf16.gmra.mrb[0].mxu0 %v1265
    %v1336 = vpop.f32.mrb[0].mxu0
    %v1337 = vadd.f32 %v1250, %v1336
    %v1338 = vpop.f32.mrb[0].mxu0
    %v1339 = vpop.f32.mrb[0].mxu0
    %v1340 = vadd.f32 %v1250, %v1339
    %v1341 = vpop.f32.mrb[0].mxu0
    %1342 = vmatprep.mubr.bf16.mxu0 0
    %1343 = vmatmul.mubr.bf16.gmra.mrb[0].mxu0 %v1268
    %v1344 = vpop.f32.mrb[0].mxu0
    %v1345 = vadd.f32 %v1250, %v1344
    %v1346 = vpop.f32.mrb[0].mxu0
    %v1347 = vpop.f32.mrb[0].mxu0
    %v1348 = vpop.f32.mrb[0].mxu0
    %1349 = vdwg.mxu0
    %v1350 = vmax.f32 %v1305, 0.0
    %v1351 = vmax.f32 %v1308, 0.0
    %v1352 = vmax.f32 %v1313, 0.0
    %v1353 = vmax.f32 %v1316, 0.0
    %v1354 = vmax.f32 %v1321, 0.0
    %v1355 = vmax.f32 %v1324, 0.0
    %v1356 = vmax.f32 %v1329, 0.0
    %v1357 = vmax.f32 %v1332, 0.0
    %v1358 = vmax.f32 %v1337, 0.0
    %v1359 = vmax.f32 %v1340, 0.0
    %v1360 = vmax.f32 %v1345, 0.0
    %1361 = vst.msk [vmem:[#allocation4] sm:$0xff] %vm1229, %v1350
    %1362 = vst.msk [vmem:[#allocation4 + $0x8] sm:$0xff] %vm1229, %v1351
    %1363 = vst.msk [vmem:[#allocation4 + $0x10] sm:$0xff] %vm1229, %v1352
    %1364 = vst.msk [vmem:[#allocation4 + $0x18] sm:$0xff] %vm1229, %v1353
    %1365 = vst.msk [vmem:[#allocation4 + $0x20] sm:$0xff] %vm1229, %v1354
    %1366 = vst.msk [vmem:[#allocation4 + $0x28] sm:$0xff] %vm1229, %v1355
    %1367 = vst.msk [vmem:[#allocation4 + $0x30] sm:$0xff] %vm1229, %v1356
    %1368 = vst.msk [vmem:[#allocation4 + $0x38] sm:$0xff] %vm1229, %v1357
    %1369 = vst.msk [vmem:[#allocation4 + $0x40] sm:$0xff] %vm1229, %v1358
    %1370 = vst.msk [vmem:[#allocation4 + $0x48] sm:$0xff] %vm1229, %v1359
    %1371 = vst.msk [vmem:[#allocation4 + $0x50] sm:$0xff] %vm1229, %v1360
    %v1372 = vld [vmem:[#allocation4] ss:$44 sm:$0x3]
    %s1373 = scalar_lea.vmem [#allocation4], 1
    %v1374 = vld [vmem:[%s1373] ss:$44 sm:$0x3]
    %v1375 = vmax.f32 %v1372, %v1374
    %s1376 = scalar_lea.vmem [#allocation4], 2
    %v1377 = vld [vmem:[%s1376] ss:$44 sm:$0x3]
    %s1378 = scalar_lea.vmem [#allocation4], 3
    %v1379 = vld [vmem:[%s1378] ss:$44 sm:$0x3]
    %v1380 = vmax.f32 %v1377, %v1379
    %s1381 = scalar_lea.vmem [#allocation4], 4
    %v1382 = vld [vmem:[%s1381] ss:$44 sm:$0x3]
    %s1383 = scalar_lea.vmem [#allocation4], 5
    %v1384 = vld [vmem:[%s1383] ss:$44 sm:$0x3]
    %v1385 = vmax.f32 %v1382, %v1384
    %s1386 = scalar_lea.vmem [#allocation4], 6
    %v1387 = vld [vmem:[%s1386] ss:$44 sm:$0x3]
    %s1388 = scalar_lea.vmem [#allocation4], 7
    %v1389 = vld [vmem:[%s1388] ss:$44 sm:$0x3]
    %v1390 = vmax.f32 %v1387, %v1389
    %s1391 = scalar_lea.vmem [#allocation4], 8
    %v1392 = vld [vmem:[%s1391] ss:$44 sm:$0x3]
    %s1393 = scalar_lea.vmem [#allocation4], 9
    %v1394 = vld [vmem:[%s1393] ss:$44 sm:$0x3]
    %v1395 = vmax.f32 %v1392, %v1394
    %s1396 = scalar_lea.vmem [#allocation4], 10
    %v1397 = vld [vmem:[%s1396] ss:$44 sm:$0x3]
    %s1398 = scalar_lea.vmem [#allocation4], 11
    %v1399 = vld [vmem:[%s1398] ss:$44 sm:$0x3]
    %v1400 = vmax.f32 %v1397, %v1399
    %s1401 = scalar_lea.vmem [#allocation4], 12
    %v1402 = vld [vmem:[%s1401] ss:$44 sm:$0x3]
    %s1403 = scalar_lea.vmem [#allocation4], 13
    %v1404 = vld [vmem:[%s1403] ss:$44 sm:$0x3]
    %v1405 = vmax.f32 %v1402, %v1404
    %s1406 = scalar_lea.vmem [#allocation4], 14
    %v1407 = vld [vmem:[%s1406] ss:$44 sm:$0x3]
    %s1408 = scalar_lea.vmem [#allocation4], 15
    %v1409 = vld [vmem:[%s1408] ss:$44 sm:$0x3]
    %v1410 = vmax.f32 %v1407, %v1409
    %s1411 = scalar_lea.vmem [#allocation4], 16
    %v1412 = vld [vmem:[%s1411] ss:$44 sm:$0x3]
    %s1413 = scalar_lea.vmem [#allocation4], 17
    %v1414 = vld [vmem:[%s1413] ss:$44 sm:$0x3]
    %v1415 = vmax.f32 %v1412, %v1414
    %s1416 = scalar_lea.vmem [#allocation4], 18
    %v1417 = vld [vmem:[%s1416] ss:$44 sm:$0x3]
    %s1418 = scalar_lea.vmem [#allocation4], 19
    %v1419 = vld [vmem:[%s1418] ss:$44 sm:$0x3]
    %v1420 = vmax.f32 %v1417, %v1419
    %s1421 = scalar_lea.vmem [#allocation4], 20
    %v1422 = vld [vmem:[%s1421] ss:$44 sm:$0x3]
    %s1423 = scalar_lea.vmem [#allocation4], 21
    %v1424 = vld [vmem:[%s1423] ss:$44 sm:$0x3]
    %v1425 = vmax.f32 %v1422, %v1424
    %s1426 = scalar_lea.vmem [#allocation4], 22
    %v1427 = vld [vmem:[%s1426] ss:$44 sm:$0x3]
    %s1428 = scalar_lea.vmem [#allocation4], 23
    %v1429 = vld [vmem:[%s1428] ss:$44 sm:$0x3]
    %v1430 = vmax.f32 %v1427, %v1429
    %s1431 = scalar_lea.vmem [#allocation4], 24
    %v1432 = vld [vmem:[%s1431] ss:$44 sm:$0x3]
    %s1433 = scalar_lea.vmem [#allocation4], 25
    %v1434 = vld [vmem:[%s1433] ss:$44 sm:$0x3]
    %v1435 = vmax.f32 %v1432, %v1434
    %s1436 = scalar_lea.vmem [#allocation4], 26
    %v1437 = vld [vmem:[%s1436] ss:$44 sm:$0x3]
    %s1438 = scalar_lea.vmem [#allocation4], 27
    %v1439 = vld [vmem:[%s1438] ss:$44 sm:$0x3]
    %v1440 = vmax.f32 %v1437, %v1439
    %s1441 = scalar_lea.vmem [#allocation4], 28
    %v1442 = vld [vmem:[%s1441] ss:$44 sm:$0x3]
    %s1443 = scalar_lea.vmem [#allocation4], 29
    %v1444 = vld [vmem:[%s1443] ss:$44 sm:$0x3]
    %v1445 = vmax.f32 %v1442, %v1444
    %s1446 = scalar_lea.vmem [#allocation4], 30
    %v1447 = vld [vmem:[%s1446] ss:$44 sm:$0x3]
    %s1448 = scalar_lea.vmem [#allocation4], 31
    %v1449 = vld [vmem:[%s1448] ss:$44 sm:$0x3]
    %v1450 = vmax.f32 %v1447, %v1449
    %s1451 = scalar_lea.vmem [#allocation4], 32
    %v1452 = vld [vmem:[%s1451] ss:$44 sm:$0x3]
    %s1453 = scalar_lea.vmem [#allocation4], 33
    %v1454 = vld [vmem:[%s1453] ss:$44 sm:$0x3]
    %v1455 = vmax.f32 %v1452, %v1454
    %s1456 = scalar_lea.vmem [#allocation4], 34
    %v1457 = vld [vmem:[%s1456] ss:$44 sm:$0x3]
    %s1458 = scalar_lea.vmem [#allocation4], 35
    %v1459 = vld [vmem:[%s1458] ss:$44 sm:$0x3]
    %v1460 = vmax.f32 %v1457, %v1459
    %s1461 = scalar_lea.vmem [#allocation4], 36
    %v1462 = vld [vmem:[%s1461] ss:$44 sm:$0x3]
    %s1463 = scalar_lea.vmem [#allocation4], 37
    %v1464 = vld [vmem:[%s1463] ss:$44 sm:$0x3]
    %v1465 = vmax.f32 %v1462, %v1464
    %s1466 = scalar_lea.vmem [#allocation4], 38
    %v1467 = vld [vmem:[%s1466] ss:$44 sm:$0x3]
    %s1468 = scalar_lea.vmem [#allocation4], 39
    %v1469 = vld [vmem:[%s1468] ss:$44 sm:$0x3]
    %v1470 = vmax.f32 %v1467, %v1469
    %s1471 = scalar_lea.vmem [#allocation4], 40
    %v1472 = vld [vmem:[%s1471] ss:$44 sm:$0x3]
    %s1473 = scalar_lea.vmem [#allocation4], 41
    %v1474 = vld [vmem:[%s1473] ss:$44 sm:$0x3]
    %v1475 = vmax.f32 %v1472, %v1474
    %s1476 = scalar_lea.vmem [#allocation4], 42
    %v1477 = vld [vmem:[%s1476] ss:$44 sm:$0x3]
    %s1478 = scalar_lea.vmem [#allocation4], 43
    %v1479 = vld [vmem:[%s1478] ss:$44 sm:$0x3]
    %v1480 = vmax.f32 %v1477, %v1479
    %1482 = vrot.lane.b32.xlu0 %v1380, 32
    %v1483 = vpop.permute.xlu0 %1482
    %1486 = vrot.lane.b32.xlu0 %v1385, 64
    %v1487 = vpop.permute.xlu0 %1486
    %1490 = vrot.lane.b32.xlu0 %v1390, 96
    %v1491 = vpop.permute.xlu0 %1490
    %1494 = vrot.lane.b32.xlu0 %v1400, 32
    %v1495 = vpop.permute.xlu0 %1494
    %1498 = vrot.lane.b32.xlu0 %v1405, 64
    %v1499 = vpop.permute.xlu0 %1498
    %1502 = vrot.lane.b32.xlu0 %v1410, 96
    %v1503 = vpop.permute.xlu0 %1502
    %1506 = vrot.lane.b32.xlu0 %v1420, 32
    %v1507 = vpop.permute.xlu0 %1506
    %1510 = vrot.lane.b32.xlu0 %v1425, 64
    %v1511 = vpop.permute.xlu0 %1510
    %1514 = vrot.lane.b32.xlu0 %v1430, 96
    %v1515 = vpop.permute.xlu0 %1514
    %1518 = vrot.lane.b32.xlu0 %v1440, 32
    %v1519 = vpop.permute.xlu0 %1518
    %1522 = vrot.lane.b32.xlu0 %v1445, 64
    %v1523 = vpop.permute.xlu0 %1522
    %1526 = vrot.lane.b32.xlu0 %v1450, 96
    %v1527 = vpop.permute.xlu0 %1526
    %v1529 = vsel %vm1229, %v1375, %v1483
    %vm1530 = vcmask 523264
    %v1531 = vsel %vm1530, %v1529, %v1487
    %vm1532 = vcmask 785408
    %v1533 = vsel %vm1532, %v1531, %v1491
    %v1534 = vsel %vm1229, %v1395, %v1495
    %v1535 = vsel %vm1530, %v1534, %v1499
    %v1536 = vsel %vm1532, %v1535, %v1503
    %v1537 = vsel %vm1229, %v1415, %v1507
    %v1538 = vsel %vm1530, %v1537, %v1511
    %v1539 = vsel %vm1532, %v1538, %v1515
    %v1540 = vsel %vm1229, %v1435, %v1519
    %v1541 = vsel %vm1530, %v1540, %v1523
    %v1542 = vsel %vm1532, %v1541, %v1527
    %1544 = vrot.lane.b32.xlu0 %v1460, 32
    %v1545 = vpop.permute.xlu0 %1544
    %1548 = vrot.lane.b32.xlu0 %v1465, 64
    %v1549 = vpop.permute.xlu0 %1548
    %1552 = vrot.lane.b32.xlu0 %v1470, 96
    %v1553 = vpop.permute.xlu0 %1552
    %1556 = vrot.lane.b32.xlu0 %v1480, 32
    %v1557 = vpop.permute.xlu0 %1556
    %v1559 = vsel %vm1229, %v1455, %v1545
    %v1560 = vsel %vm1530, %v1559, %v1549
    %v1561 = vsel %vm1532, %v1560, %v1553
    %v1562 = vsel %vm1229, %v1475, %v1557
    %v1563 = vpack.c.bf16 %v1533, %v1533
    %v1564 = vpack.c.bf16 %v1536, %v1536
    %v1565 = vpack.c.bf16 %v1539, %v1539
    %v1566 = vpack.c.bf16 %v1542, %v1542
    %v1567 = vpack.c.bf16 %v1561, %v1561
    %v1568 = vpack.c.bf16 %v1562, %v1562
    %v1569 = vlaneseq
    %v1570 = vshrl.u32 %v1569, 7
    %v1571 = vsub.s32 0, %v1570
    %v1572 = vrot.slane %v229, %v1571
    %v1661 = vunpack.c.l.b16 %v231
    %v1662 = vunpack.c.l.b16 %v232
    %v1663 = vunpack.c.l.b16 %v233
    %v1664 = vunpack.c.l.b16 %v234
    %v1665 = vunpack.c.l.b16 %v235
    %v1666 = vunpack.c.l.b16 %v236
    %v1667 = vunpack.c.l.b16 %v237
    %v1668 = vunpack.c.l.b16 %v238
    %v1669 = vunpack.c.l.b16 %v239
    %v1670 = vunpack.c.l.b16 %v240
    %v1671 = vunpack.c.l.b16 %v241
    %v1672 = vunpack.c.l.b16 %v242
    %v1673 = vunpack.c.l.b16 %v243
    %v1674 = vunpack.c.l.b16 %v244
    %v1675 = vunpack.c.l.b16 %v245
    %v1676 = vunpack.c.l.b16 %v246
    %v1677 = vunpack.c.l.b16 %v247
    %v1678 = vunpack.c.l.b16 %v248
    %v1679 = vunpack.c.l.b16 %v249
    %v1680 = vunpack.c.l.b16 %v250
    %v1681 = vunpack.c.l.b16 %v251
    %v1682 = vunpack.c.l.b16 %v252
    %v1683 = vunpack.c.l.b16 %v253
    %v1684 = vunpack.c.l.b16 %v254
    %v1685 = vunpack.c.l.b16 %v255
    %v1686 = vunpack.c.l.b16 %v256
    %v1687 = vunpack.c.l.b16 %v257
    %v1688 = vunpack.c.l.b16 %v258
    %v1689 = vunpack.c.l.b16 %v259
    %v1690 = vunpack.c.l.b16 %v260
    %v1691 = vunpack.c.l.b16 %v261
    %v1692 = vunpack.c.l.b16 %v262
    %v1693 = vunpack.c.l.b16 %v263
    %v1694 = vunpack.c.l.b16 %v264
    %v1695 = vunpack.c.l.b16 %v265
    %v1696 = vunpack.c.l.b16 %v266
    %v1697 = vunpack.c.l.b16 %v267
    %v1698 = vunpack.c.l.b16 %v268
    %v1699 = vunpack.c.l.b16 %v269
    %v1700 = vunpack.c.l.b16 %v270
    %v1701 = vunpack.c.l.b16 %v271
    %v1702 = vunpack.c.l.b16 %v272
    %v1703 = vunpack.c.l.b16 %v273
    %v1704 = vunpack.c.l.b16 %v274
    %v1705 = vunpack.c.l.b16 %v275
    %v1706 = vunpack.c.l.b16 %v276
    %v1707 = vunpack.c.l.b16 %v277
    %v1708 = vunpack.c.l.b16 %v278
    %v1709 = vunpack.c.l.b16 %v279
    %v1710 = vunpack.c.l.b16 %v280
    %v1711 = vunpack.c.l.b16 %v281
    %v1712 = vunpack.c.l.b16 %v282
    %v1713 = vunpack.c.l.b16 %v283
    %v1714 = vunpack.c.l.b16 %v284
    %v1715 = vunpack.c.l.b16 %v285
    %v1716 = vunpack.c.l.b16 %v286
    %v1717 = vunpack.c.l.b16 %v287
    %v1718 = vunpack.c.l.b16 %v288
    %v1719 = vunpack.c.l.b16 %v289
    %v1720 = vunpack.c.l.b16 %v290
    %v1721 = vunpack.c.l.b16 %v291
    %v1722 = vunpack.c.l.b16 %v292
    %v1723 = vunpack.c.l.b16 %v293
    %v1724 = vunpack.c.l.b16 %v294
    %v1725 = vunpack.c.l.b16 %v295
    %v1726 = vunpack.c.l.b16 %v296
    %v1727 = vunpack.c.l.b16 %v297
    %v1728 = vunpack.c.l.b16 %v298
    %v1729 = vunpack.c.l.b16 %v299
    %v1730 = vunpack.c.l.b16 %v300
    %v1731 = vunpack.c.l.b16 %v301
    %v1732 = vunpack.c.l.b16 %v302
    %v1733 = vunpack.c.l.b16 %v303
    %v1734 = vunpack.c.l.b16 %v304
    %v1735 = vunpack.c.l.b16 %v305
    %v1736 = vunpack.c.l.b16 %v306
    %v1737 = vunpack.c.l.b16 %v307
    %v1738 = vunpack.c.l.b16 %v308
    %v1739 = vunpack.c.l.b16 %v309
    %v1740 = vunpack.c.l.b16 %v310
    %v1741 = vunpack.c.l.b16 %v311
    %v1742 = vunpack.c.l.b16 %v312
    %v1743 = vunpack.c.l.b16 %v313
    %v1744 = vunpack.c.l.b16 %v314
    %v1745 = vunpack.c.l.b16 %v315
    %v1746 = vunpack.c.l.b16 %v316
    %v1747 = vunpack.c.l.b16 %v317
    %v1748 = vunpack.c.l.b16 %v318
    %v1749 = vpack.c.b16 %v1662, %v1661
    %v1750 = vpack.c.b16 %v1664, %v1663
    %v1751 = vpack.c.b16 %v1666, %v1665
    %v1752 = vpack.c.b16 %v1668, %v1667
    %v1753 = vpack.c.b16 %v1670, %v1669
    %v1754 = vpack.c.b16 %v1672, %v1671
    %v1755 = vpack.c.b16 %v1674, %v1673
    %v1756 = vpack.c.b16 %v1676, %v1675
    %v1757 = vpack.c.b16 %v1678, %v1677
    %v1758 = vpack.c.b16 %v1680, %v1679
    %v1759 = vpack.c.b16 %v1682, %v1681
    %v1760 = vpack.c.b16 %v1684, %v1683
    %v1761 = vpack.c.b16 %v1686, %v1685
    %v1762 = vpack.c.b16 %v1688, %v1687
    %v1763 = vpack.c.b16 %v1690, %v1689
    %v1764 = vpack.c.b16 %v1692, %v1691
    %v1765 = vpack.c.b16 %v1694, %v1693
    %v1766 = vpack.c.b16 %v1696, %v1695
    %v1767 = vpack.c.b16 %v1698, %v1697
    %v1768 = vpack.c.b16 %v1700, %v1699
    %v1769 = vpack.c.b16 %v1702, %v1701
    %v1770 = vpack.c.b16 %v1704, %v1703
    %v1771 = vpack.c.b16 %v1706, %v1705
    %v1772 = vpack.c.b16 %v1708, %v1707
    %v1773 = vpack.c.b16 %v1710, %v1709
    %v1774 = vpack.c.b16 %v1712, %v1711
    %v1775 = vpack.c.b16 %v1714, %v1713
    %v1776 = vpack.c.b16 %v1716, %v1715
    %v1777 = vpack.c.b16 %v1718, %v1717
    %v1778 = vpack.c.b16 %v1720, %v1719
    %v1779 = vpack.c.b16 %v1722, %v1721
    %v1780 = vpack.c.b16 %v1724, %v1723
    %v1781 = vpack.c.b16 %v1726, %v1725
    %v1782 = vpack.c.b16 %v1728, %v1727
    %v1783 = vpack.c.b16 %v1730, %v1729
    %v1784 = vpack.c.b16 %v1732, %v1731
    %v1785 = vpack.c.b16 %v1734, %v1733
    %v1786 = vpack.c.b16 %v1736, %v1735
    %v1787 = vpack.c.b16 %v1738, %v1737
    %v1788 = vpack.c.b16 %v1740, %v1739
    %v1789 = vpack.c.b16 %v1742, %v1741
    %v1790 = vpack.c.b16 %v1744, %v1743
    %v1791 = vpack.c.b16 %v1746, %v1745
    %v1792 = vpack.c.b16 %v1748, %v1747
    %v1838 = vsel %vm1530, %v1568, 0
    %1840 = vmatprep.subr.bf16.mxu0 0
    %1841 = vmatpush1.bf16.msra.mxu0 %v1749
    %1842 = vmatprep.subr.bf16.mxu0 0
    %1843 = vmatpush1.bf16.msra.mxu0 %v1750
    %1844 = vmatprep.subr.bf16.mxu0 0
    %1845 = vmatpush1.bf16.msra.mxu0 %v1751
    %1846 = vmatprep.subr.bf16.mxu0 0
    %1847 = vmatpush1.bf16.msra.mxu0 %v1752
    %1848 = vmatprep.subr.bf16.mxu0 0
    %1849 = vmatpush1.bf16.msra.mxu0 %v1753
    %1850 = vmatprep.subr.bf16.mxu0 0
    %1851 = vmatpush1.bf16.msra.mxu0 %v1754
    %1852 = vmatprep.subr.bf16.mxu0 0
    %1853 = vmatpush1.bf16.msra.mxu0 %v1755
    %1854 = vmatprep.subr.bf16.mxu0 0
    %1855 = vmatpush1.bf16.msra.mxu0 %v1756
    %1856 = vmatprep.subr.bf16.mxu0 0
    %1857 = vmatpush1.bf16.msra.mxu0 %v1757
    %1858 = vmatprep.subr.bf16.mxu0 0
    %1859 = vmatpush1.bf16.msra.mxu0 %v1758
    %1860 = vmatprep.subr.bf16.mxu0 0
    %1861 = vmatpush1.bf16.msra.mxu0 %v1759
    %1862 = vmatprep.subr.bf16.mxu0 0
    %1863 = vmatpush1.bf16.msra.mxu0 %v1760
    %1864 = vmatprep.subr.bf16.mxu0 0
    %1865 = vmatpush1.bf16.msra.mxu0 %v1761
    %1866 = vmatprep.subr.bf16.mxu0 0
    %1867 = vmatpush1.bf16.msra.mxu0 %v1762
    %1868 = vmatprep.subr.bf16.mxu0 0
    %1869 = vmatpush1.bf16.msra.mxu0 %v1763
    %1870 = vmatprep.subr.bf16.mxu0 0
    %1871 = vmatpush1.bf16.msra.mxu0 %v1764
    %1872 = vmatprep.mubr.bf16.mxu0 %v1564
    %1873 = vmatmul.mubr.bf16.gmra.mrb[0].mxu0 %v1563
    %v1874 = vpop.f32.mrb[0].mxu0
    %v1875 = vadd.f32 %v1572, %v1874
    %v1876 = vpop.f32.mrb[0].mxu0
    %v1877 = vpop.f32.mrb[0].mxu0
    %v1878 = vpop.f32.mrb[0].mxu0
    %1879 = vdwg.mxu0
    %1880 = vmatprep.subr.bf16.mxu0 0
    %1881 = vmatpush1.bf16.msra.mxu0 %v1765
    %1882 = vmatprep.subr.bf16.mxu0 0
    %1883 = vmatpush1.bf16.msra.mxu0 %v1766
    %1884 = vmatprep.subr.bf16.mxu0 0
    %1885 = vmatpush1.bf16.msra.mxu0 %v1767
    %1886 = vmatprep.subr.bf16.mxu0 0
    %1887 = vmatpush1.bf16.msra.mxu0 %v1768
    %1888 = vmatprep.subr.bf16.mxu0 0
    %1889 = vmatpush1.bf16.msra.mxu0 %v1769
    %1890 = vmatprep.subr.bf16.mxu0 0
    %1891 = vmatpush1.bf16.msra.mxu0 %v1770
    %1892 = vmatprep.subr.bf16.mxu0 0
    %1893 = vmatpush1.bf16.msra.mxu0 %v1771
    %1894 = vmatprep.subr.bf16.mxu0 0
    %1895 = vmatpush1.bf16.msra.mxu0 %v1772
    %1896 = vmatprep.subr.bf16.mxu0 0
    %1897 = vmatpush1.bf16.msra.mxu0 %v1773
    %1898 = vmatprep.subr.bf16.mxu0 0
    %1899 = vmatpush1.bf16.msra.mxu0 %v1774
    %1900 = vmatprep.subr.bf16.mxu0 0
    %1901 = vmatpush1.bf16.msra.mxu0 %v1775
    %1902 = vmatprep.subr.bf16.mxu0 0
    %1903 = vmatpush1.bf16.msra.mxu0 %v1776
    %1904 = vmatprep.subr.bf16.mxu0 0
    %1905 = vmatpush1.bf16.msra.mxu0 %v1777
    %1906 = vmatprep.subr.bf16.mxu0 0
    %1907 = vmatpush1.bf16.msra.mxu0 %v1778
    %1908 = vmatprep.subr.bf16.mxu0 0
    %1909 = vmatpush1.bf16.msra.mxu0 %v1779
    %1910 = vmatprep.subr.bf16.mxu0 0
    %1911 = vmatpush1.bf16.msra.mxu0 %v1780
    %1912 = vmatprep.mubr.bf16.mxu0 %v1566
    %1913 = vmatmul.mubr.bf16.gmra.mrb[0].mxu0 %v1565
    %v1914 = vpop.f32.mrb[0].mxu0
    %v1915 = vadd.f32 %v1875, %v1914
    %v1916 = vpop.f32.mrb[0].mxu0
    %v1917 = vpop.f32.mrb[0].mxu0
    %v1918 = vpop.f32.mrb[0].mxu0
    %1919 = vdwg.mxu0
    %1920 = vmatprep.subr.bf16.mxu0 0
    %1921 = vmatpush1.bf16.msra.mxu0 %v1781
    %1922 = vmatprep.subr.bf16.mxu0 0
    %1923 = vmatpush1.bf16.msra.mxu0 %v1782
    %1924 = vmatprep.subr.bf16.mxu0 0
    %1925 = vmatpush1.bf16.msra.mxu0 %v1783
    %1926 = vmatprep.subr.bf16.mxu0 0
    %1927 = vmatpush1.bf16.msra.mxu0 %v1784
    %1928 = vmatprep.subr.bf16.mxu0 0
    %1929 = vmatpush1.bf16.msra.mxu0 %v1785
    %1930 = vmatprep.subr.bf16.mxu0 0
    %1931 = vmatpush1.bf16.msra.mxu0 %v1786
    %1932 = vmatprep.subr.bf16.mxu0 0
    %1933 = vmatpush1.bf16.msra.mxu0 %v1787
    %1934 = vmatprep.subr.bf16.mxu0 0
    %1935 = vmatpush1.bf16.msra.mxu0 %v1788
    %1936 = vmatprep.subr.bf16.mxu0 0
    %1937 = vmatpush1.bf16.msra.mxu0 %v1789
    %1938 = vmatprep.subr.bf16.mxu0 0
    %1939 = vmatpush1.bf16.msra.mxu0 %v1790
    %1940 = vmatprep.subr.bf16.mxu0 0
    %1941 = vmatpush1.bf16.msra.mxu0 %v1791
    %1942 = vmatprep.subr.bf16.mxu0 0
    %1943 = vmatpush1.bf16.msra.mxu0 %v1792
    %1944 = vmatprep.subr.bf16.mxu0 0
    %1945 = vmatpush1.bf16.msra.mxu0 0
    %1946 = vmatprep.subr.bf16.mxu0 0
    %1947 = vmatpush1.bf16.msra.mxu0 0
    %1948 = vmatprep.subr.bf16.mxu0 0
    %1949 = vmatpush1.bf16.msra.mxu0 0
    %1950 = vmatprep.subr.bf16.mxu0 0
    %1951 = vmatpush1.bf16.msra.mxu0 0
    %1952 = vmatprep.mubr.bf16.mxu0 %v1838
    %1953 = vmatmul.mubr.bf16.gmra.mrb[0].mxu0 %v1567
    %v1954 = vpop.f32.mrb[0].mxu0
    %v1955 = vadd.f32 %v1915, %v1954
    %v1956 = vpop.f32.mrb[0].mxu0
    %v1957 = vpop.f32.mrb[0].mxu0
    %v1958 = vpop.f32.mrb[0].mxu0
    %1959 = vdwg.mxu0
    %v1960 = vmax.f32 %v1955, 0.0
    %v1961 = vpack.c.bf16 %v1960, %v1960
    %v1962 = vlaneseq
    %v1963 = vshrl.u32 %v1962, 7
    %v1964 = vsub.s32 0, %v1963
    %v1965 = vrot.slane %v230, %v1964
    %v1982 = vunpack.c.l.b16 %v319
    %v1983 = vunpack.c.l.b16 %v320
    %v1984 = vunpack.c.l.b16 %v321
    %v1985 = vunpack.c.l.b16 %v322
    %v1986 = vunpack.c.l.b16 %v323
    %v1987 = vunpack.c.l.b16 %v324
    %v1988 = vunpack.c.l.b16 %v325
    %v1989 = vunpack.c.l.b16 %v326
    %v1990 = vunpack.c.l.b16 %v327
    %v1991 = vunpack.c.l.b16 %v328
    %v1992 = vunpack.c.l.b16 %v329
    %v1993 = vunpack.c.l.b16 %v330
    %v1994 = vunpack.c.l.b16 %v331
    %v1995 = vunpack.c.l.b16 %v332
    %v1996 = vunpack.c.l.b16 %v333
    %v1997 = vunpack.c.l.b16 %v334
    %v1998 = vpack.c.b16 %v1983, %v1982
    %v1999 = vpack.c.b16 %v1985, %v1984
    %v2000 = vpack.c.b16 %v1987, %v1986
    %v2001 = vpack.c.b16 %v1989, %v1988
    %v2002 = vpack.c.b16 %v1991, %v1990
    %v2003 = vpack.c.b16 %v1993, %v1992
    %v2004 = vpack.c.b16 %v1995, %v1994
    %v2005 = vpack.c.b16 %v1997, %v1996
    %2014 = vmatprep.subr.bf16.mxu0 0
    %2015 = vmatpush1.bf16.msra.mxu0 %v1998
    %2016 = vmatprep.subr.bf16.mxu0 0
    %2017 = vmatpush1.bf16.msra.mxu0 %v1999
    %2018 = vmatprep.subr.bf16.mxu0 0
    %2019 = vmatpush1.bf16.msra.mxu0 %v2000
    %2020 = vmatprep.subr.bf16.mxu0 0
    %2021 = vmatpush1.bf16.msra.mxu0 %v2001
    %2022 = vmatprep.subr.bf16.mxu0 0
    %2023 = vmatpush1.bf16.msra.mxu0 %v2002
    %2024 = vmatprep.subr.bf16.mxu0 0
    %2025 = vmatpush1.bf16.msra.mxu0 %v2003
    %2026 = vmatprep.subr.bf16.mxu0 0
    %2027 = vmatpush1.bf16.msra.mxu0 %v2004
    %2028 = vmatprep.subr.bf16.mxu0 0
    %2029 = vmatpush1.bf16.msra.mxu0 %v2005
    %2030 = vmatprep.subr.bf16.mxu0 0
    %2031 = vmatpush1.bf16.msra.mxu0 0
    %2032 = vmatprep.subr.bf16.mxu0 0
    %2033 = vmatpush1.bf16.msra.mxu0 0
    %2034 = vmatprep.subr.bf16.mxu0 0
    %2035 = vmatpush1.bf16.msra.mxu0 0
    %2036 = vmatprep.subr.bf16.mxu0 0
    %2037 = vmatpush1.bf16.msra.mxu0 0
    %2038 = vmatprep.subr.bf16.mxu0 0
    %2039 = vmatpush1.bf16.msra.mxu0 0
    %2040 = vmatprep.subr.bf16.mxu0 0
    %2041 = vmatpush1.bf16.msra.mxu0 0
    %2042 = vmatprep.subr.bf16.mxu0 0
    %2043 = vmatpush1.bf16.msra.mxu0 0
    %2044 = vmatprep.subr.bf16.mxu0 0
    %2045 = vmatpush1.bf16.msra.mxu0 0
    %2046 = vmatprep.mubr.bf16.mxu0 0
    %2047 = vmatmul.mubr.bf16.gmra.mrb[0].mxu0 %v1961
    %v2048 = vpop.f32.mrb[0].mxu0
    %v2049 = vadd.f32 %v1965, %v2048
    %v2050 = vpop.f32.mrb[0].mxu0
    %v2051 = vpop.f32.mrb[0].mxu0
    %v2052 = vpop.f32.mrb[0].mxu0
    %2053 = vdwg.mxu0
    %vm2054 = vcmask 25600
    %2055 = vst.msk [vmem:[#allocation5] sm:$0x3] %vm2054, %v2049
    // Predicated region
    $region14: #{lidar_cnn_forward.1} parent=1 // pred_check
      _
    $region15: #{lidar_cnn_forward.1} parent=1 // pred_check_branch
      %2057 = sbr.rel (0) target = $region17
    $region16: #{lidar_cnn_forward.1} parent=1 // pred_region
      %s2059 = ssub.s32 32, 32
      %2060 = vsyncadd [#allocation6], %s2059
      %s2062 = sshll.u32 [#allocation5], 4
      %s2063 = int_to_ptr.vmem [resolvable:$true] %s2062
      %2065 = dma.vmem_to_hbm [thread:$0]  %s2063, 32, %s3, [#allocation6]
    $region17: #{lidar_cnn_forward.1} parent=1 // pred_fallthru
      _
    // Predicated region
    $region18: #{lidar_cnn_forward.1} parent=1 // pred_check
      _
    $region19: #{lidar_cnn_forward.1} parent=1 // pred_check_branch
      %2067 = sbr.rel (0) target = $region21
    $region20: #{lidar_cnn_forward.1} parent=1 // pred_region
      %2068 = dma.done [#allocation6], 32
    $region21: #{lidar_cnn_forward.1} parent=1 // pred_fallthru
      _
    %2069 = vsyncpa [#allocation6], 1

</llo_original>
